<compile_context>
chip_gen: v7x
topology: tpu7x:2x2x1
jax: 0.10.0
libtpu: 0.0.40
codegen_flags: <defaults>
</compile_context>

<pallas_src>
import functools

import jax
import jax.numpy as jnp
from jax.experimental import pallas as pl
from jax.experimental.pallas import tpu as pltpu


VMEM_LIMIT = 48 * 1024 * 1024   # <= v7x physical VMEM; fine on v5e/v6e too
FUSED_N_LIMIT = 1024            # fully-VMEM-resident fused path below this N


# ---------------------------------------------------------------------------
# Kernel A: fully fused forward for small/medium graphs (single pallas_call,
# everything resident in VMEM).  Inputs arrive in f32; bf16 casts for the MXU
# happen in-kernel so no separate HBM cast pass is needed.
# ---------------------------------------------------------------------------
def make_fused_forward_kernel(inv_nl):
    def kernel(adj_ref, x_ref, w0_ref, b0_ref, w1_ref, b1_ref, wp_ref, bp_ref,
               loss_ref):
        bf16, f32 = jnp.bfloat16, jnp.float32
        adj = adj_ref[...].astype(bf16)

        # Layer 1: ReLU(A @ (X @ W0) + b0)
        hw0 = jnp.dot(x_ref[...].astype(bf16), w0_ref[...].astype(bf16),
                      preferred_element_type=f32).astype(bf16)
        h0 = jnp.maximum(
            jnp.dot(adj, hw0, preferred_element_type=f32) + b0_ref[...], 0.0)

        # Layer 2: ReLU(A @ (h0 @ W1) + b1)
        hw1 = jnp.dot(h0.astype(bf16), w1_ref[...].astype(bf16),
                      preferred_element_type=f32).astype(bf16)
        h1 = jnp.maximum(
            jnp.dot(adj, hw1, preferred_element_type=f32) + b1_ref[...], 0.0)

        # Prediction + loss
        logits = jnp.dot(h1.astype(bf16), wp_ref[...].astype(bf16),
                         preferred_element_type=f32) + bp_ref[...]
        loss_ref[...] = jnp.sum(logits * logits, axis=(0, 1),
                                keepdims=True) * inv_nl

    return kernel


def fused_forward(adj, x, w0, b0, w1, b1, wp, bp):
    n, f = x.shape
    h = w0.shape[1]
    l = wp.shape[1]
    inv_nl = 1.0 / float(n * l)
    return pl.pallas_call(
        make_fused_forward_kernel(inv_nl),
        out_shape=jax.ShapeDtypeStruct((1, 1), jnp.float32),
        grid_spec=pltpu.PrefetchScalarGridSpec(
            num_scalar_prefetch=0,
            grid=(1,),
            in_specs=[
                pl.BlockSpec((n, n), lambda i: (0, 0)),   # adjacency (f32)
                pl.BlockSpec((n, f), lambda i: (0, 0)),   # node features
                pl.BlockSpec((f, h), lambda i: (0, 0)),   # W0
                pl.BlockSpec((1, h), lambda i: (0, 0)),   # b0
                pl.BlockSpec((h, h), lambda i: (0, 0)),   # W1
                pl.BlockSpec((1, h), lambda i: (0, 0)),   # b1
                pl.BlockSpec((h, l), lambda i: (0, 0)),   # Wp
                pl.BlockSpec((1, l), lambda i: (0, 0)),   # bp
            ],
            out_specs=pl.BlockSpec((1, 1), lambda i: (0, 0)),
        ),
        compiler_params=pltpu.CompilerParams(
            dimension_semantics=("arbitrary",),
            vmem_limit_bytes=VMEM_LIMIT,
        ),
    )(adj, x, w0, b0, w1, b1, wp, bp)


# ---------------------------------------------------------------------------
# Kernel B (large N, layer 1): HW1 = ReLU(A @ HW0 + b0) @ W1
# grid = (row tiles, reduction tiles); reduction axis last ("arbitrary"),
# row axis "parallel" so both v7x TensorCores get work.
# ---------------------------------------------------------------------------
def prop_relu_matmul_kernel(adj_ref, hw_ref, b_ref, w_next_ref, out_ref,
                            acc_ref):
    k = pl.program_id(1)

    @pl.when(k == 0)
    def _():
        acc_ref[...] = jnp.zeros_like(acc_ref)

    acc_ref[...] += jnp.dot(adj_ref[...], hw_ref[...],
                            preferred_element_type=jnp.float32)

    @pl.when(k == pl.num_programs(1) - 1)
    def _():
        h = jnp.maximum(acc_ref[...] + b_ref[...], 0.0)
        out_ref[...] = jnp.dot(h.astype(jnp.bfloat16), w_next_ref[...],
                               preferred_element_type=jnp.float32
                               ).astype(out_ref.dtype)


def prop_relu_matmul(adj, hw, b, w_next, *, tm, tk):
    n = adj.shape[0]
    f_mid = hw.shape[1]
    f_out = w_next.shape[1]
    assert n % tm == 0 and n % tk == 0, "demo tiling assumes N % tile == 0"
    return pl.pallas_call(
        prop_relu_matmul_kernel,
        out_shape=jax.ShapeDtypeStruct((n, f_out), jnp.bfloat16),
        grid_spec=pltpu.PrefetchScalarGridSpec(
            num_scalar_prefetch=0,
            grid=(n // tm, n // tk),
            in_specs=[
                pl.BlockSpec((tm, tk), lambda i, k: (i, k)),        # adj tile
                pl.BlockSpec((tk, f_mid), lambda i, k: (k, 0)),     # HW0 rows
                pl.BlockSpec((1, f_mid), lambda i, k: (0, 0)),      # b0 (resident)
                pl.BlockSpec((f_mid, f_out), lambda i, k: (0, 0)),  # W1 (resident)
            ],
            out_specs=pl.BlockSpec((tm, f_out), lambda i, k: (i, 0)),
            scratch_shapes=[pltpu.VMEM((tm, f_mid), jnp.float32)],
        ),
        compiler_params=pltpu.CompilerParams(
            dimension_semantics=("parallel", "arbitrary"),
            vmem_limit_bytes=VMEM_LIMIT,
        ),
    )(adj, hw, b, w_next)


# ---------------------------------------------------------------------------
# Kernel C (large N, layer 2 + prediction + loss):
#   loss = sum((ReLU(A @ HW1 + b1) @ Wp + bp)^2) / (N * L)
# h1 / logits never hit HBM; the sum of squares is accumulated in a resident
# (1,1) block, so both grid axes must be "arbitrary" (sequential).
# TODO(synk): per-row-tile partial sums would let the row axis stay "parallel"
#             for v7x; kept as a resident scalar for simplicity.
# ---------------------------------------------------------------------------
def make_prop_relu_pred_loss_kernel(inv_nl):
    def kernel(adj_ref, hw_ref, b_ref, wp_ref, bp_ref, loss_ref, acc_ref):
        i = pl.program_id(0)
        k = pl.program_id(1)
        last_i = pl.num_programs(0) - 1
        last_k = pl.num_programs(1) - 1

        @pl.when(jnp.logical_and(i == 0, k == 0))
        def _():
            loss_ref[...] = jnp.zeros_like(loss_ref)

        @pl.when(k == 0)
        def _():
            acc_ref[...] = jnp.zeros_like(acc_ref)

        acc_ref[...] += jnp.dot(adj_ref[...], hw_ref[...],
                                preferred_element_type=jnp.float32)

        @pl.when(k == last_k)
        def _():
            h = jnp.maximum(acc_ref[...] + b_ref[...], 0.0)
            logits = jnp.dot(h.astype(jnp.bfloat16), wp_ref[...],
                             preferred_element_type=jnp.float32) + bp_ref[...]
            loss_ref[...] += jnp.sum(logits * logits, axis=(0, 1),
                                     keepdims=True)

        @pl.when(jnp.logical_and(i == last_i, k == last_k))
        def _():
            loss_ref[...] = loss_ref[...] * inv_nl   # divide by the TRUE N*L

    return kernel


def prop_relu_pred_loss(adj, hw, b, wp, bp, *, tm, tk):
    n = adj.shape[0]
    f_mid = hw.shape[1]
    l = wp.shape[1]
    assert n % tm == 0 and n % tk == 0, "demo tiling assumes N % tile == 0"
    inv_nl = 1.0 / float(n * l)
    return pl.pallas_call(
        make_prop_relu_pred_loss_kernel(inv_nl),
        out_shape=jax.ShapeDtypeStruct((1, 1), jnp.float32),
        grid_spec=pltpu.PrefetchScalarGridSpec(
            num_scalar_prefetch=0,
            grid=(n // tm, n // tk),
            in_specs=[
                pl.BlockSpec((tm, tk), lambda i, k: (i, k)),     # adj tile
                pl.BlockSpec((tk, f_mid), lambda i, k: (k, 0)),  # HW1 rows
                pl.BlockSpec((1, f_mid), lambda i, k: (0, 0)),   # b1 (resident)
                pl.BlockSpec((f_mid, l), lambda i, k: (0, 0)),   # Wp (resident)
                pl.BlockSpec((1, l), lambda i, k: (0, 0)),       # bp (resident)
            ],
            out_specs=pl.BlockSpec((1, 1), lambda i, k: (0, 0)),
            scratch_shapes=[pltpu.VMEM((tm, f_mid), jnp.float32)],
        ),
        compiler_params=pltpu.CompilerParams(
            dimension_semantics=("arbitrary", "arbitrary"),
            vmem_limit_bytes=VMEM_LIMIT,
        ),
    )(adj, hw, b, wp, bp)


# ---------------------------------------------------------------------------
# Full forward.
# ---------------------------------------------------------------------------
def _tiled_forward(adj, x, w0, b0, w1, b1, wp, bp, tile):
    bf16 = jnp.bfloat16
    adj_b = adj.astype(bf16)
    # Tiny prologue matmul (HW0 = X @ W0) in plain JAX, per the re-association
    # removal: the N^2 propagation then accumulates in f32 with no bf16 recast.
    hw0 = jnp.dot(x.astype(bf16), w0.astype(bf16),
                  preferred_element_type=jnp.float32).astype(bf16)
    hw1 = prop_relu_matmul(adj_b, hw0, b0, w1.astype(bf16), tm=tile, tk=tile)
    return prop_relu_pred_loss(adj_b, hw1, b1, wp.astype(bf16), bp,
                               tm=tile, tk=tile)


@functools.partial(jax.jit, static_argnames=("force_tiled", "tile"))
def model_forward(adj, x, w0, b0, w1, b1, wp, bp, force_tiled=False, tile=None):
    n = adj.shape[0]
    if (not force_tiled) and n <= FUSED_N_LIMIT:
        loss = fused_forward(adj, x, w0, b0, w1, b1, wp, bp)
    else:
        t = tile if tile is not None else min(512, n)
        loss = _tiled_forward(adj, x, w0, b0, w1, b1, wp, bp, t)
    return loss[0, 0]


# ---------------------------------------------------------------------------
# References.
# ---------------------------------------------------------------------------
def reference_forward_bf16(adj, x, w0, b0, w1, b1, wp, bp):
    """Mirrors the kernels' bf16-MXU / f32-accumulate arithmetic exactly."""
    bf16, f32 = jnp.bfloat16, jnp.float32
    adj_b = adj.astype(bf16)
    hw0 = jnp.dot(x.astype(bf16), w0.astype(bf16),
                  preferred_element_type=f32).astype(bf16)
    h0 = jnp.maximum(jnp.dot(adj_b, hw0, preferred_element_type=f32) + b0, 0.0)
    hw1 = jnp.dot(h0.astype(bf16), w1.astype(bf16),
                  preferred_element_type=f32).astype(bf16)
    h1 = jnp.maximum(jnp.dot(adj_b, hw1, preferred_element_type=f32) + b1, 0.0)
    logits = jnp.dot(h1.astype(bf16), wp.astype(bf16),
                     preferred_element_type=f32) + bp
    return jnp.sum(logits * logits) / float(logits.shape[0] * logits.shape[1])


def reference_forward_f32(adj, x, w0, b0, w1, b1, wp, bp):
    """Pure-f32 semantics of the module."""
    h0 = jnp.maximum(adj @ (x @ w0) + b0, 0.0)
    h1 = jnp.maximum(adj @ (h0 @ w1) + b1, 0.0)
    logits = h1 @ wp + bp
    return jnp.mean(logits * logits)


if __name__ == "__main__":
    # Small synthetic graph consistent with the module's data fields:
    # N=256 nodes, num_node_feat=16, hidden=32, num_labels=4.
    N, F, H, L = 256, 16, 32, 4
    key = jax.random.PRNGKey(0)
    k_x, k_a, k_w0, k_b0, k_w1, k_b1, k_wp, k_bp = jax.random.split(key, 8)

    # Node features (md.x)
    x = jax.random.normal(k_x, (N, F), dtype=jnp.float32)

    # Deterministic random adjacency with self-loops, symmetrically normalized.
    a = (jax.random.uniform(k_a, (N, N)) > 0.9).astype(jnp.float32)
    a = jnp.maximum(a, a.T) + jnp.eye(N, dtype=jnp.float32)
    deg = jnp.sum(a, axis=1)
    d_inv_sqrt = 1.0 / jnp.sqrt(deg)
    adj = a * d_inv_sqrt[:, None] * d_inv_sqrt[None, :]

    # Deterministic parameter init (Glorot-ish scale).
    w0 = jax.random.normal(k_w0, (F, H), dtype=jnp.float32) * (1.0 / jnp.sqrt(F))
    b0 = jax.random.normal(k_b0, (1, H), dtype=jnp.float32) * 0.01
    w1 = jax.random.normal(k_w1, (H, H), dtype=jnp.float32) * (1.0 / jnp.sqrt(H))
    b1 = jax.random.normal(k_b1, (1, H), dtype=jnp.float32) * 0.01
    wp = jax.random.normal(k_wp, (H, L), dtype=jnp.float32) * (1.0 / jnp.sqrt(H))
    bp = jax.random.normal(k_bp, (1, L), dtype=jnp.float32) * 0.01

    # Path 1: fully fused single-kernel forward (used for N <= 1024).
    loss_fused = jax.block_until_ready(
        model_forward(adj, x, w0, b0, w1, b1, wp, bp))
    # Path 2: tiled large-N path, forced here with 128-tiles to exercise the
    # (2, 2) grid, the f32 accumulator and the fused loss epilogue.
    loss_tiled = jax.block_until_ready(
        model_forward(adj, x, w0, b0, w1, b1, wp, bp,
                      force_tiled=True, tile=128))

    ref_bf16 = reference_forward_bf16(adj, x, w0, b0, w1, b1, wp, bp)
    ref_f32 = reference_forward_f32(adj, x, w0, b0, w1, b1, wp, bp)

    # Both paths must agree with each other (same math, different tiling) ...
    assert jnp.allclose(loss_fused, loss_tiled, rtol=1e-2, atol=1e-5), (
        loss_fused, loss_tiled)
    # ... tightly with the bf16-mirroring reference ...
    assert jnp.allclose(loss_fused, ref_bf16, rtol=2e-2, atol=1e-5), (
        loss_fused, ref_bf16)
    assert jnp.allclose(loss_tiled, ref_bf16, rtol=2e-2, atol=1e-5), (
        loss_tiled, ref_bf16)
    # ... and loosely with the pure-f32 module semantics (bf16 MXU inputs).
    assert jnp.allclose(loss_fused, ref_f32, rtol=1e-1, atol=1e-4), (
        loss_fused, ref_f32)

    print("KERNEL_OK")
</pallas_src>

<mosaic_0001>
module attributes {stable_mosaic.version = 11 : i64} {
  func.func @kernel(%arg0: i32, %arg1: memref<256x256xf32, #tpu.memory_space<vmem>>, %arg2: memref<256x16xf32, #tpu.memory_space<vmem>>, %arg3: memref<16x32xf32, #tpu.memory_space<vmem>>, %arg4: memref<1x32xf32, #tpu.memory_space<vmem>>, %arg5: memref<32x32xf32, #tpu.memory_space<vmem>>, %arg6: memref<1x32xf32, #tpu.memory_space<vmem>>, %arg7: memref<32x4xf32, #tpu.memory_space<vmem>>, %arg8: memref<1x4xf32, #tpu.memory_space<vmem>>, %arg9: memref<1x1xf32, #tpu.memory_space<vmem>>) attributes {dimension_semantics = [#tpu.dimension_semantics<arbitrary>], iteration_bounds = array<i64: 1>, scalar_prefetch = 0 : i64, scratch_operands = 0 : i64, tpu.core_type = #tpu.core_type<tc>, window_params = [{pipeline_mode = #tpu.pipeline_mode<synchronous>, transform_indices = @transform_0, window_bounds = array<i64: 256, 256>}, {pipeline_mode = #tpu.pipeline_mode<synchronous>, transform_indices = @transform_1, window_bounds = array<i64: 256, 16>}, {pipeline_mode = #tpu.pipeline_mode<synchronous>, transform_indices = @transform_2, window_bounds = array<i64: 16, 32>}, {pipeline_mode = #tpu.pipeline_mode<synchronous>, transform_indices = @transform_3, window_bounds = array<i64: 1, 32>}, {pipeline_mode = #tpu.pipeline_mode<synchronous>, transform_indices = @transform_4, window_bounds = array<i64: 32, 32>}, {pipeline_mode = #tpu.pipeline_mode<synchronous>, transform_indices = @transform_5, window_bounds = array<i64: 1, 32>}, {pipeline_mode = #tpu.pipeline_mode<synchronous>, transform_indices = @transform_6, window_bounds = array<i64: 32, 4>}, {pipeline_mode = #tpu.pipeline_mode<synchronous>, transform_indices = @transform_7, window_bounds = array<i64: 1, 4>}, {pipeline_mode = #tpu.pipeline_mode<synchronous>, transform_indices = @transform_8, window_bounds = array<i64: 1, 1>}]} {
    %c0 = arith.constant 0 : index
    %c0_0 = arith.constant 0 : index
    %0 = vector.load %arg1[%c0, %c0_0] : memref<256x256xf32, #tpu.memory_space<vmem>>, vector<256x256xf32>
    %1 = arith.truncf %0 : vector<256x256xf32> to vector<256x256xbf16>
    %c0_1 = arith.constant 0 : index
    %c0_2 = arith.constant 0 : index
    %2 = vector.load %arg2[%c0_1, %c0_2] : memref<256x16xf32, #tpu.memory_space<vmem>>, vector<256x16xf32>
    %3 = arith.truncf %2 : vector<256x16xf32> to vector<256x16xbf16>
    %c0_3 = arith.constant 0 : index
    %c0_4 = arith.constant 0 : index
    %4 = vector.load %arg3[%c0_3, %c0_4] : memref<16x32xf32, #tpu.memory_space<vmem>>, vector<16x32xf32>
    %5 = arith.truncf %4 : vector<16x32xf32> to vector<16x32xbf16>
    %cst = arith.constant dense<0.000000e+00> : vector<256x32xf32>
    %6 = tpu.matmul %3, %5, %cst {dimension_numbers = #tpu.dot_dimension_numbers<[1], [0], [0], [1], [0, 0, 1, 1], [], []>} : vector<256x16xbf16>, vector<16x32xbf16>, vector<256x32xf32> -> vector<256x32xf32>
    %7 = arith.truncf %6 : vector<256x32xf32> to vector<256x32xbf16>
    %cst_5 = arith.constant dense<0.000000e+00> : vector<256x32xf32>
    %8 = tpu.matmul %1, %7, %cst_5 {dimension_numbers = #tpu.dot_dimension_numbers<[1], [0], [0], [1], [0, 0, 1, 1], [], []>} : vector<256x256xbf16>, vector<256x32xbf16>, vector<256x32xf32> -> vector<256x32xf32>
    %c0_6 = arith.constant 0 : index
    %c0_7 = arith.constant 0 : index
    %9 = vector.load %arg4[%c0_6, %c0_7] : memref<1x32xf32, #tpu.memory_space<vmem>>, vector<1x32xf32>
    %10 = vector.broadcast %9 : vector<1x32xf32> to vector<256x32xf32>
    %11 = arith.addf %8, %10 : vector<256x32xf32>
    %cst_8 = arith.constant 0.000000e+00 : f32
    %12 = vector.broadcast %cst_8 : f32 to vector<256x32xf32>
    %13 = arith.maximumf %11, %12 : vector<256x32xf32>
    %14 = arith.truncf %13 : vector<256x32xf32> to vector<256x32xbf16>
    %c0_9 = arith.constant 0 : index
    %c0_10 = arith.constant 0 : index
    %15 = vector.load %arg5[%c0_9, %c0_10] : memref<32x32xf32, #tpu.memory_space<vmem>>, vector<32x32xf32>
    %16 = arith.truncf %15 : vector<32x32xf32> to vector<32x32xbf16>
    %cst_11 = arith.constant dense<0.000000e+00> : vector<256x32xf32>
    %17 = tpu.matmul %14, %16, %cst_11 {dimension_numbers = #tpu.dot_dimension_numbers<[1], [0], [0], [1], [0, 0, 1, 1], [], []>} : vector<256x32xbf16>, vector<32x32xbf16>, vector<256x32xf32> -> vector<256x32xf32>
    %18 = arith.truncf %17 : vector<256x32xf32> to vector<256x32xbf16>
    %cst_12 = arith.constant dense<0.000000e+00> : vector<256x32xf32>
    %19 = tpu.matmul %1, %18, %cst_12 {dimension_numbers = #tpu.dot_dimension_numbers<[1], [0], [0], [1], [0, 0, 1, 1], [], []>} : vector<256x256xbf16>, vector<256x32xbf16>, vector<256x32xf32> -> vector<256x32xf32>
    %c0_13 = arith.constant 0 : index
    %c0_14 = arith.constant 0 : index
    %20 = vector.load %arg6[%c0_13, %c0_14] : memref<1x32xf32, #tpu.memory_space<vmem>>, vector<1x32xf32>
    %21 = vector.broadcast %20 : vector<1x32xf32> to vector<256x32xf32>
    %22 = arith.addf %19, %21 : vector<256x32xf32>
    %cst_15 = arith.constant 0.000000e+00 : f32
    %23 = vector.broadcast %cst_15 : f32 to vector<256x32xf32>
    %24 = arith.maximumf %22, %23 : vector<256x32xf32>
    %25 = arith.truncf %24 : vector<256x32xf32> to vector<256x32xbf16>
    %c0_16 = arith.constant 0 : index
    %c0_17 = arith.constant 0 : index
    %26 = vector.load %arg7[%c0_16, %c0_17] : memref<32x4xf32, #tpu.memory_space<vmem>>, vector<32x4xf32>
    %27 = arith.truncf %26 : vector<32x4xf32> to vector<32x4xbf16>
    %cst_18 = arith.constant dense<0.000000e+00> : vector<256x4xf32>
    %28 = tpu.matmul %25, %27, %cst_18 {dimension_numbers = #tpu.dot_dimension_numbers<[1], [0], [0], [1], [0, 0, 1, 1], [], []>} : vector<256x32xbf16>, vector<32x4xbf16>, vector<256x4xf32> -> vector<256x4xf32>
    %c0_19 = arith.constant 0 : index
    %c0_20 = arith.constant 0 : index
    %29 = vector.load %arg8[%c0_19, %c0_20] : memref<1x4xf32, #tpu.memory_space<vmem>>, vector<1x4xf32>
    %30 = vector.broadcast %29 : vector<1x4xf32> to vector<256x4xf32>
    %31 = arith.addf %28, %30 : vector<256x4xf32>
    %32 = arith.mulf %31, %31 : vector<256x4xf32>
    %33 = vector.shape_cast %32 : vector<256x4xf32> to vector<1x256x4xf32>
    %cst_21 = arith.constant dense<0.000000e+00> : vector<1xf32>
    %34 = vector.multi_reduction <add>, %33, %cst_21 [1, 2] : vector<1x256x4xf32> to vector<1xf32>
    %35 = vector.shape_cast %34 : vector<1xf32> to vector<1x1x1xf32>
    %36 = vector.extract %35[0, 0, 0] : f32 from vector<1x1x1xf32>
    %37 = vector.broadcast %36 : f32 to vector<1x1xf32>
    %cst_22 = arith.constant 9.765625E-4 : f32
    %38 = vector.broadcast %cst_22 : f32 to vector<1x1xf32>
    %39 = arith.mulf %37, %38 : vector<1x1xf32>
    %c0_23 = arith.constant 0 : index
    %c0_24 = arith.constant 0 : index
    %40 = vector.load %arg9[%c0_23, %c0_24] : memref<1x1xf32, #tpu.memory_space<vmem>>, vector<1x1xf32>
    tpu.vector_store %arg9[%c0_23, %c0_24], %39 {strides = array<i32>} : memref<1x1xf32, #tpu.memory_space<vmem>>, vector<1x1xf32>,
    return
  }
  func.func @transform_0(%arg0: i32) -> (i32, i32) {
    %c0_i32 = arith.constant 0 : i32
    %c0_i32_0 = arith.constant 0 : i32
    %c0_i32_1 = arith.constant 0 : i32
    return %c0_i32, %c0_i32_0 : i32, i32
  }
  func.func @transform_1(%arg0: i32) -> (i32, i32) {
    %c0_i32 = arith.constant 0 : i32
    %c0_i32_0 = arith.constant 0 : i32
    %c0_i32_1 = arith.constant 0 : i32
    return %c0_i32, %c0_i32_0 : i32, i32
  }
  func.func @transform_2(%arg0: i32) -> (i32, i32) {
    %c0_i32 = arith.constant 0 : i32
    %c0_i32_0 = arith.constant 0 : i32
    %c0_i32_1 = arith.constant 0 : i32
    return %c0_i32, %c0_i32_0 : i32, i32
  }
  func.func @transform_3(%arg0: i32) -> (i32, i32) {
    %c0_i32 = arith.constant 0 : i32
    %c0_i32_0 = arith.constant 0 : i32
    %c0_i32_1 = arith.constant 0 : i32
    return %c0_i32, %c0_i32_0 : i32, i32
  }
  func.func @transform_4(%arg0: i32) -> (i32, i32) {
    %c0_i32 = arith.constant 0 : i32
    %c0_i32_0 = arith.constant 0 : i32
    %c0_i32_1 = arith.constant 0 : i32
    return %c0_i32, %c0_i32_0 : i32, i32
  }
  func.func @transform_5(%arg0: i32) -> (i32, i32) {
    %c0_i32 = arith.constant 0 : i32
    %c0_i32_0 = arith.constant 0 : i32
    %c0_i32_1 = arith.constant 0 : i32
    return %c0_i32, %c0_i32_0 : i32, i32
  }
  func.func @transform_6(%arg0: i32) -> (i32, i32) {
    %c0_i32 = arith.constant 0 : i32
    %c0_i32_0 = arith.constant 0 : i32
    %c0_i32_1 = arith.constant 0 : i32
    return %c0_i32, %c0_i32_0 : i32, i32
  }
  func.func @transform_7(%arg0: i32) -> (i32, i32) {
    %c0_i32 = arith.constant 0 : i32
    %c0_i32_0 = arith.constant 0 : i32
    %c0_i32_1 = arith.constant 0 : i32
    return %c0_i32, %c0_i32_0 : i32, i32
  }
  func.func @transform_8(%arg0: i32) -> (i32, i32) {
    %c0_i32 = arith.constant 0 : i32
    %c0_i32_0 = arith.constant 0 : i32
    %c0_i32_1 = arith.constant 0 : i32
    return %c0_i32, %c0_i32_0 : i32, i32
  }
}

</mosaic_0001>

<llo_original>
// kernel: model_forward.1
$region0: #{model_forward.1}
  #allocation0 [shape = 'u32[]', space=smem, size = 0x4, offset = 0x4, fixed_abs, tag = 'smem constant byte address 0x4 - core index']
  #allocation1 [shape = 'u32[144,128]{1,0:T(1,128)}', space=vmem, size = 0x12000, scoped, tag = 'internal scratch']
  %s0 = inlined_call_operand.hbm [shape: f32[256,256], index: 0, kind: input, shape index: {}]
  %s1 = inlined_call_operand.vmem [shape: f32[256,16], index: 1, kind: input, shape index: {}]
  %s2 = inlined_call_operand.vmem [shape: f32[16,32], index: 2, kind: input, shape index: {}]
  %s3 = inlined_call_operand.vmem [shape: f32[1,32], index: 3, kind: input, shape index: {}]
  %s4 = inlined_call_operand.vmem [shape: f32[32,32], index: 4, kind: input, shape index: {}]
  %s5 = inlined_call_operand.vmem [shape: f32[1,32], index: 5, kind: input, shape index: {}]
  %s6 = inlined_call_operand.vmem [shape: f32[32,4], index: 6, kind: input, shape index: {}]
  %s7 = inlined_call_operand.vmem [shape: f32[1,4], index: 7, kind: input, shape index: {}]
  %s8 = inlined_call_operand.hbm [shape: f32[1,1], index: 8, kind: output, shape index: {}]
  %s9 = sld [smem:[#allocation0]]
  $region46: #{model_forward.1} parent=0
    _
  %s11 = ssub.s32 1, %s9
  %s12 = scalar_select 0, %s11, %s9
  $region1: #{model_forward.1} parent=0
    #allocation2 [shape = 'u8[262144]{0}', space=vmem, size = 0x40000, scoped, tag = 'input window, operand 0, single buffered']
    #allocation3 [shape = 's32[1]{0}', space=sflag, size = 0x4, scoped, tag = 'scoped memory for model_forward.1']
    #allocation4 [shape = 's32[1]{0}', space=sflag, size = 0x4, scoped, tag = 'scoped memory for model_forward.1']
    #allocation5 [shape = 'u8[512]{0}', space=vmem, size = 0x400, scoped, tag = 'output window, operand 0, single buffered']
    %13 = vsyncpa [#allocation3], 0
    %14 = vsyncpa [#allocation4], 0
    // Predicated region
    $region2: #{model_forward.1} parent=1 // pred_check
      _
    $region3: #{model_forward.1} parent=1 // pred_check_branch
      %16 = sbr.rel (0) target = $region5
    $region4: #{model_forward.1} parent=1 // pred_region
      %s18 = ssub.s32 8192, 8192
      %19 = vsyncadd [#allocation3], %s18
      %s20 = sshll.u32 [#allocation2], 4
      %s21 = int_to_ptr.vmem [resolvable:$true] %s20
      %26 = dma.hbm_to_vmem [thread:$0]  %s0, 8192, %s21, [#allocation3], 256, 256, 16
    $region5: #{model_forward.1} parent=1 // pred_fallthru
      _
    // Predicated region
    $region6: #{model_forward.1} parent=1 // pred_check
      _
    $region7: #{model_forward.1} parent=1 // pred_check_branch
      %28 = sbr.rel (0) target = $region9
    $region8: #{model_forward.1} parent=1 // pred_region
      _
    $region9: #{model_forward.1} parent=1 // pred_fallthru
      _
    // Predicated region
    $region10: #{model_forward.1} parent=1 // pred_check
      _
    $region11: #{model_forward.1} parent=1 // pred_check_branch
      %30 = sbr.rel (0) target = $region13
    $region12: #{model_forward.1} parent=1 // pred_region
      _
    $region13: #{model_forward.1} parent=1 // pred_fallthru
      _
    // Predicated region
    $region14: #{model_forward.1} parent=1 // pred_check
      _
    $region15: #{model_forward.1} parent=1 // pred_check_branch
      %32 = sbr.rel (0) target = $region17
    $region16: #{model_forward.1} parent=1 // pred_region
      _
    $region17: #{model_forward.1} parent=1 // pred_fallthru
      _
    // Predicated region
    $region18: #{model_forward.1} parent=1 // pred_check
      _
    $region19: #{model_forward.1} parent=1 // pred_check_branch
      %34 = sbr.rel (0) target = $region21
    $region20: #{model_forward.1} parent=1 // pred_region
      _
    $region21: #{model_forward.1} parent=1 // pred_fallthru
      _
    // Predicated region
    $region22: #{model_forward.1} parent=1 // pred_check
      _
    $region23: #{model_forward.1} parent=1 // pred_check_branch
      %36 = sbr.rel (0) target = $region25
    $region24: #{model_forward.1} parent=1 // pred_region
      _
    $region25: #{model_forward.1} parent=1 // pred_fallthru
      _
    // Predicated region
    $region26: #{model_forward.1} parent=1 // pred_check
      _
    $region27: #{model_forward.1} parent=1 // pred_check_branch
      %38 = sbr.rel (0) target = $region29
    $region28: #{model_forward.1} parent=1 // pred_region
      _
    $region29: #{model_forward.1} parent=1 // pred_fallthru
      _
    // Predicated region
    $region30: #{model_forward.1} parent=1 // pred_check
      _
    $region31: #{model_forward.1} parent=1 // pred_check_branch
      %40 = sbr.rel (0) target = $region33
    $region32: #{model_forward.1} parent=1 // pred_region
      _
    $region33: #{model_forward.1} parent=1 // pred_fallthru
      _
    // Predicated region
    $region34: #{model_forward.1} parent=1 // pred_check
      _
    $region35: #{model_forward.1} parent=1 // pred_check_branch
      %42 = sbr.rel (0) target = $region37
    $region36: #{model_forward.1} parent=1 // pred_region
      %43 = dma.done [#allocation3], 8192
    $region37: #{model_forward.1} parent=1 // pred_fallthru
      _
    %v45 = vld [vmem:[#allocation2] sm:$0xff]
    %v46 = vld [vmem:[#allocation2 + $0x8] sm:$0xff]
    %v47 = vld [vmem:[#allocation2 + $0x10] sm:$0xff]
    %v48 = vld [vmem:[#allocation2 + $0x18] sm:$0xff]
    %v49 = vld [vmem:[#allocation2 + $0x20] sm:$0xff]
    %v50 = vld [vmem:[#allocation2 + $0x28] sm:$0xff]
    %v51 = vld [vmem:[#allocation2 + $0x30] sm:$0xff]
    %v52 = vld [vmem:[#allocation2 + $0x38] sm:$0xff]
    %v53 = vld [vmem:[#allocation2 + $0x40] sm:$0xff]
    %v54 = vld [vmem:[#allocation2 + $0x48] sm:$0xff]
    %v55 = vld [vmem:[#allocation2 + $0x50] sm:$0xff]
    %v56 = vld [vmem:[#allocation2 + $0x58] sm:$0xff]
    %v57 = vld [vmem:[#allocation2 + $0x60] sm:$0xff]
    %v58 = vld [vmem:[#allocation2 + $0x68] sm:$0xff]
    %v59 = vld [vmem:[#allocation2 + $0x70] sm:$0xff]
    %v60 = vld [vmem:[#allocation2 + $0x78] sm:$0xff]
    %v61 = vld [vmem:[#allocation2 + $0x80] sm:$0xff]
    %v62 = vld [vmem:[#allocation2 + $0x88] sm:$0xff]
    %v63 = vld [vmem:[#allocation2 + $0x90] sm:$0xff]
    %v64 = vld [vmem:[#allocation2 + $0x98] sm:$0xff]
    %v65 = vld [vmem:[#allocation2 + $0xa0] sm:$0xff]
    %v66 = vld [vmem:[#allocation2 + $0xa8] sm:$0xff]
    %v67 = vld [vmem:[#allocation2 + $0xb0] sm:$0xff]
    %v68 = vld [vmem:[#allocation2 + $0xb8] sm:$0xff]
    %v69 = vld [vmem:[#allocation2 + $0xc0] sm:$0xff]
    %v70 = vld [vmem:[#allocation2 + $0xc8] sm:$0xff]
    %v71 = vld [vmem:[#allocation2 + $0xd0] sm:$0xff]
    %v72 = vld [vmem:[#allocation2 + $0xd8] sm:$0xff]
    %v73 = vld [vmem:[#allocation2 + $0xe0] sm:$0xff]
    %v74 = vld [vmem:[#allocation2 + $0xe8] sm:$0xff]
    %v75 = vld [vmem:[#allocation2 + $0xf0] sm:$0xff]
    %v76 = vld [vmem:[#allocation2 + $0xf8] sm:$0xff]
    %v77 = vld [vmem:[#allocation2 + $0x100] sm:$0xff]
    %v78 = vld [vmem:[#allocation2 + $0x108] sm:$0xff]
    %v79 = vld [vmem:[#allocation2 + $0x110] sm:$0xff]
    %v80 = vld [vmem:[#allocation2 + $0x118] sm:$0xff]
    %v81 = vld [vmem:[#allocation2 + $0x120] sm:$0xff]
    %v82 = vld [vmem:[#allocation2 + $0x128] sm:$0xff]
    %v83 = vld [vmem:[#allocation2 + $0x130] sm:$0xff]
    %v84 = vld [vmem:[#allocation2 + $0x138] sm:$0xff]
    %v85 = vld [vmem:[#allocation2 + $0x140] sm:$0xff]
    %v86 = vld [vmem:[#allocation2 + $0x148] sm:$0xff]
    %v87 = vld [vmem:[#allocation2 + $0x150] sm:$0xff]
    %v88 = vld [vmem:[#allocation2 + $0x158] sm:$0xff]
    %v89 = vld [vmem:[#allocation2 + $0x160] sm:$0xff]
    %v90 = vld [vmem:[#allocation2 + $0x168] sm:$0xff]
    %v91 = vld [vmem:[#allocation2 + $0x170] sm:$0xff]
    %v92 = vld [vmem:[#allocation2 + $0x178] sm:$0xff]
    %v93 = vld [vmem:[#allocation2 + $0x180] sm:$0xff]
    %v94 = vld [vmem:[#allocation2 + $0x188] sm:$0xff]
    %v95 = vld [vmem:[#allocation2 + $0x190] sm:$0xff]
    %v96 = vld [vmem:[#allocation2 + $0x198] sm:$0xff]
    %v97 = vld [vmem:[#allocation2 + $0x1a0] sm:$0xff]
    %v98 = vld [vmem:[#allocation2 + $0x1a8] sm:$0xff]
    %v99 = vld [vmem:[#allocation2 + $0x1b0] sm:$0xff]
    %v100 = vld [vmem:[#allocation2 + $0x1b8] sm:$0xff]
    %v101 = vld [vmem:[#allocation2 + $0x1c0] sm:$0xff]
    %v102 = vld [vmem:[#allocation2 + $0x1c8] sm:$0xff]
    %v103 = vld [vmem:[#allocation2 + $0x1d0] sm:$0xff]
    %v104 = vld [vmem:[#allocation2 + $0x1d8] sm:$0xff]
    %v105 = vld [vmem:[#allocation2 + $0x1e0] sm:$0xff]
    %v106 = vld [vmem:[#allocation2 + $0x1e8] sm:$0xff]
    %v107 = vld [vmem:[#allocation2 + $0x1f0] sm:$0xff]
    %v108 = vld [vmem:[#allocation2 + $0x1f8] sm:$0xff]
    %v109 = vpack.c.bf16 %v47, %v45
    %v110 = vpack.c.bf16 %v48, %v46
    %v111 = vpack.c.bf16 %v51, %v49
    %v112 = vpack.c.bf16 %v52, %v50
    %v113 = vpack.c.bf16 %v55, %v53
    %v114 = vpack.c.bf16 %v56, %v54
    %v115 = vpack.c.bf16 %v59, %v57
    %v116 = vpack.c.bf16 %v60, %v58
    %v117 = vpack.c.bf16 %v63, %v61
    %v118 = vpack.c.bf16 %v64, %v62
    %v119 = vpack.c.bf16 %v67, %v65
    %v120 = vpack.c.bf16 %v68, %v66
    %v121 = vpack.c.bf16 %v71, %v69
    %v122 = vpack.c.bf16 %v72, %v70
    %v123 = vpack.c.bf16 %v75, %v73
    %v124 = vpack.c.bf16 %v76, %v74
    %v125 = vpack.c.bf16 %v79, %v77
    %v126 = vpack.c.bf16 %v80, %v78
    %v127 = vpack.c.bf16 %v83, %v81
    %v128 = vpack.c.bf16 %v84, %v82
    %v129 = vpack.c.bf16 %v87, %v85
    %v130 = vpack.c.bf16 %v88, %v86
    %v131 = vpack.c.bf16 %v91, %v89
    %v132 = vpack.c.bf16 %v92, %v90
    %v133 = vpack.c.bf16 %v95, %v93
    %v134 = vpack.c.bf16 %v96, %v94
    %v135 = vpack.c.bf16 %v99, %v97
    %v136 = vpack.c.bf16 %v100, %v98
    %v137 = vpack.c.bf16 %v103, %v101
    %v138 = vpack.c.bf16 %v104, %v102
    %v139 = vpack.c.bf16 %v107, %v105
    %v140 = vpack.c.bf16 %v108, %v106
    %v141 = vld [vmem:[%s1] sm:$0xff]
    %v142 = vld [vmem:[%s1 + $0x8] sm:$0xff]
    %v143 = vld [vmem:[%s1 + $0x10] sm:$0xff]
    %v144 = vld [vmem:[%s1 + $0x18] sm:$0xff]
    %v145 = vld [vmem:[%s1 + $0x20] sm:$0xff]
    %v146 = vld [vmem:[%s1 + $0x28] sm:$0xff]
    %v147 = vld [vmem:[%s1 + $0x30] sm:$0xff]
    %v148 = vld [vmem:[%s1 + $0x38] sm:$0xff]
    %v149 = vld [vmem:[%s1 + $0x40] sm:$0xff]
    %v150 = vld [vmem:[%s1 + $0x48] sm:$0xff]
    %v151 = vld [vmem:[%s1 + $0x50] sm:$0xff]
    %v152 = vld [vmem:[%s1 + $0x58] sm:$0xff]
    %v153 = vld [vmem:[%s1 + $0x60] sm:$0xff]
    %v154 = vld [vmem:[%s1 + $0x68] sm:$0xff]
    %v155 = vld [vmem:[%s1 + $0x70] sm:$0xff]
    %v156 = vld [vmem:[%s1 + $0x78] sm:$0xff]
    %v157 = vld [vmem:[%s1 + $0x80] sm:$0xff]
    %v158 = vld [vmem:[%s1 + $0x88] sm:$0xff]
    %v159 = vld [vmem:[%s1 + $0x90] sm:$0xff]
    %v160 = vld [vmem:[%s1 + $0x98] sm:$0xff]
    %v161 = vld [vmem:[%s1 + $0xa0] sm:$0xff]
    %v162 = vld [vmem:[%s1 + $0xa8] sm:$0xff]
    %v163 = vld [vmem:[%s1 + $0xb0] sm:$0xff]
    %v164 = vld [vmem:[%s1 + $0xb8] sm:$0xff]
    %v165 = vld [vmem:[%s1 + $0xc0] sm:$0xff]
    %v166 = vld [vmem:[%s1 + $0xc8] sm:$0xff]
    %v167 = vld [vmem:[%s1 + $0xd0] sm:$0xff]
    %v168 = vld [vmem:[%s1 + $0xd8] sm:$0xff]
    %v169 = vld [vmem:[%s1 + $0xe0] sm:$0xff]
    %v170 = vld [vmem:[%s1 + $0xe8] sm:$0xff]
    %v171 = vld [vmem:[%s1 + $0xf0] sm:$0xff]
    %v172 = vld [vmem:[%s1 + $0xf8] sm:$0xff]
    %v173 = vpack.c.bf16 %v142, %v141
    %v174 = vpack.c.bf16 %v144, %v143
    %v175 = vpack.c.bf16 %v146, %v145
    %v176 = vpack.c.bf16 %v148, %v147
    %v177 = vpack.c.bf16 %v150, %v149
    %v178 = vpack.c.bf16 %v152, %v151
    %v179 = vpack.c.bf16 %v154, %v153
    %v180 = vpack.c.bf16 %v156, %v155
    %v181 = vpack.c.bf16 %v158, %v157
    %v182 = vpack.c.bf16 %v160, %v159
    %v183 = vpack.c.bf16 %v162, %v161
    %v184 = vpack.c.bf16 %v164, %v163
    %v185 = vpack.c.bf16 %v166, %v165
    %v186 = vpack.c.bf16 %v168, %v167
    %v187 = vpack.c.bf16 %v170, %v169
    %v188 = vpack.c.bf16 %v172, %v171
    %v189 = vld [vmem:[%s2] sm:$0xff]
    %v190 = vld [vmem:[%s2 + $0x8] sm:$0xff]
    %v191 = vpack.c.bf16 %v190, %v189
    %vm192 = vcmask 130048
    %v194 = vsel %vm192, %v173, 0
    %v197 = vsel %vm192, %v174, 0
    %v200 = vsel %vm192, %v175, 0
    %v203 = vsel %vm192, %v176, 0
    %v206 = vsel %vm192, %v177, 0
    %v209 = vsel %vm192, %v178, 0
    %v212 = vsel %vm192, %v179, 0
    %v215 = vsel %vm192, %v180, 0
    %v218 = vsel %vm192, %v181, 0
    %v221 = vsel %vm192, %v182, 0
    %v224 = vsel %vm192, %v183, 0
    %v227 = vsel %vm192, %v184, 0
    %v230 = vsel %vm192, %v185, 0
    %v233 = vsel %vm192, %v186, 0
    %v236 = vsel %vm192, %v187, 0
    %v239 = vsel %vm192, %v188, 0
    %241 = vmatprep.subr.bf16.mxu0 0
    %242 = vmatpush1.bf16.msra.mxu0 %v191
    %243 = vmatprep.subr.bf16.mxu0 0
    %244 = vmatpush1.bf16.msra.mxu0 0
    %245 = vmatprep.subr.bf16.mxu0 0
    %246 = vmatpush1.bf16.msra.mxu0 0
    %247 = vmatprep.subr.bf16.mxu0 0
    %248 = vmatpush1.bf16.msra.mxu0 0
    %249 = vmatprep.subr.bf16.mxu0 0
    %250 = vmatpush1.bf16.msra.mxu0 0
    %251 = vmatprep.subr.bf16.mxu0 0
    %252 = vmatpush1.bf16.msra.mxu0 0
    %253 = vmatprep.subr.bf16.mxu0 0
    %254 = vmatpush1.bf16.msra.mxu0 0
    %255 = vmatprep.subr.bf16.mxu0 0
    %256 = vmatpush1.bf16.msra.mxu0 0
    %257 = vmatprep.subr.bf16.mxu0 0
    %258 = vmatpush1.bf16.msra.mxu0 0
    %259 = vmatprep.subr.bf16.mxu0 0
    %260 = vmatpush1.bf16.msra.mxu0 0
    %261 = vmatprep.subr.bf16.mxu0 0
    %262 = vmatpush1.bf16.msra.mxu0 0
    %263 = vmatprep.subr.bf16.mxu0 0
    %264 = vmatpush1.bf16.msra.mxu0 0
    %265 = vmatprep.subr.bf16.mxu0 0
    %266 = vmatpush1.bf16.msra.mxu0 0
    %267 = vmatprep.subr.bf16.mxu0 0
    %268 = vmatpush1.bf16.msra.mxu0 0
    %269 = vmatprep.subr.bf16.mxu0 0
    %270 = vmatpush1.bf16.msra.mxu0 0
    %271 = vmatprep.subr.bf16.mxu0 0
    %272 = vmatpush1.bf16.msra.mxu0 0
    %273 = vmatprep.mubr.bf16.mxu0 0
    %274 = vmatmul.mubr.bf16.gmra.mrb[0].mxu0 %v194
    %v275 = vpop.f32.mrb[0].mxu0
    %v276 = vadd.f32 0.0, %v275
    %v277 = vpop.f32.mrb[0].mxu0
    %v278 = vpop.f32.mrb[0].mxu0
    %v279 = vadd.f32 0.0, %v278
    %v280 = vpop.f32.mrb[0].mxu0
    %281 = vmatprep.mubr.bf16.mxu0 0
    %282 = vmatmul.mubr.bf16.gmra.mrb[0].mxu0 %v197
    %v283 = vpop.f32.mrb[0].mxu0
    %v284 = vadd.f32 0.0, %v283
    %v285 = vpop.f32.mrb[0].mxu0
    %v286 = vpop.f32.mrb[0].mxu0
    %v287 = vadd.f32 0.0, %v286
    %v288 = vpop.f32.mrb[0].mxu0
    %289 = vmatprep.mubr.bf16.mxu0 0
    %290 = vmatmul.mubr.bf16.gmra.mrb[0].mxu0 %v200
    %v291 = vpop.f32.mrb[0].mxu0
    %v292 = vadd.f32 0.0, %v291
    %v293 = vpop.f32.mrb[0].mxu0
    %v294 = vpop.f32.mrb[0].mxu0
    %v295 = vadd.f32 0.0, %v294
    %v296 = vpop.f32.mrb[0].mxu0
    %297 = vmatprep.mubr.bf16.mxu0 0
    %298 = vmatmul.mubr.bf16.gmra.mrb[0].mxu0 %v203
    %v299 = vpop.f32.mrb[0].mxu0
    %v300 = vadd.f32 0.0, %v299
    %v301 = vpop.f32.mrb[0].mxu0
    %v302 = vpop.f32.mrb[0].mxu0
    %v303 = vadd.f32 0.0, %v302
    %v304 = vpop.f32.mrb[0].mxu0
    %305 = vmatprep.mubr.bf16.mxu0 0
    %306 = vmatmul.mubr.bf16.gmra.mrb[0].mxu0 %v206
    %v307 = vpop.f32.mrb[0].mxu0
    %v308 = vadd.f32 0.0, %v307
    %v309 = vpop.f32.mrb[0].mxu0
    %v310 = vpop.f32.mrb[0].mxu0
    %v311 = vadd.f32 0.0, %v310
    %v312 = vpop.f32.mrb[0].mxu0
    %313 = vmatprep.mubr.bf16.mxu0 0
    %314 = vmatmul.mubr.bf16.gmra.mrb[0].mxu0 %v209
    %v315 = vpop.f32.mrb[0].mxu0
    %v316 = vadd.f32 0.0, %v315
    %v317 = vpop.f32.mrb[0].mxu0
    %v318 = vpop.f32.mrb[0].mxu0
    %v319 = vadd.f32 0.0, %v318
    %v320 = vpop.f32.mrb[0].mxu0
    %321 = vmatprep.mubr.bf16.mxu0 0
    %322 = vmatmul.mubr.bf16.gmra.mrb[0].mxu0 %v212
    %v323 = vpop.f32.mrb[0].mxu0
    %v324 = vadd.f32 0.0, %v323
    %v325 = vpop.f32.mrb[0].mxu0
    %v326 = vpop.f32.mrb[0].mxu0
    %v327 = vadd.f32 0.0, %v326
    %v328 = vpop.f32.mrb[0].mxu0
    %329 = vmatprep.mubr.bf16.mxu0 0
    %330 = vmatmul.mubr.bf16.gmra.mrb[0].mxu0 %v215
    %v331 = vpop.f32.mrb[0].mxu0
    %v332 = vadd.f32 0.0, %v331
    %v333 = vpop.f32.mrb[0].mxu0
    %v334 = vpop.f32.mrb[0].mxu0
    %v335 = vadd.f32 0.0, %v334
    %v336 = vpop.f32.mrb[0].mxu0
    %337 = vmatprep.mubr.bf16.mxu0 0
    %338 = vmatmul.mubr.bf16.gmra.mrb[0].mxu0 %v218
    %v339 = vpop.f32.mrb[0].mxu0
    %v340 = vadd.f32 0.0, %v339
    %v341 = vpop.f32.mrb[0].mxu0
    %v342 = vpop.f32.mrb[0].mxu0
    %v343 = vadd.f32 0.0, %v342
    %v344 = vpop.f32.mrb[0].mxu0
    %345 = vmatprep.mubr.bf16.mxu0 0
    %346 = vmatmul.mubr.bf16.gmra.mrb[0].mxu0 %v221
    %v347 = vpop.f32.mrb[0].mxu0
    %v348 = vadd.f32 0.0, %v347
    %v349 = vpop.f32.mrb[0].mxu0
    %v350 = vpop.f32.mrb[0].mxu0
    %v351 = vadd.f32 0.0, %v350
    %v352 = vpop.f32.mrb[0].mxu0
    %353 = vmatprep.mubr.bf16.mxu0 0
    %354 = vmatmul.mubr.bf16.gmra.mrb[0].mxu0 %v224
    %v355 = vpop.f32.mrb[0].mxu0
    %v356 = vadd.f32 0.0, %v355
    %v357 = vpop.f32.mrb[0].mxu0
    %v358 = vpop.f32.mrb[0].mxu0
    %v359 = vadd.f32 0.0, %v358
    %v360 = vpop.f32.mrb[0].mxu0
    %361 = vmatprep.mubr.bf16.mxu0 0
    %362 = vmatmul.mubr.bf16.gmra.mrb[0].mxu0 %v227
    %v363 = vpop.f32.mrb[0].mxu0
    %v364 = vadd.f32 0.0, %v363
    %v365 = vpop.f32.mrb[0].mxu0
    %v366 = vpop.f32.mrb[0].mxu0
    %v367 = vadd.f32 0.0, %v366
    %v368 = vpop.f32.mrb[0].mxu0
    %369 = vmatprep.mubr.bf16.mxu0 0
    %370 = vmatmul.mubr.bf16.gmra.mrb[0].mxu0 %v230
    %v371 = vpop.f32.mrb[0].mxu0
    %v372 = vadd.f32 0.0, %v371
    %v373 = vpop.f32.mrb[0].mxu0
    %v374 = vpop.f32.mrb[0].mxu0
    %v375 = vadd.f32 0.0, %v374
    %v376 = vpop.f32.mrb[0].mxu0
    %377 = vmatprep.mubr.bf16.mxu0 0
    %378 = vmatmul.mubr.bf16.gmra.mrb[0].mxu0 %v233
    %v379 = vpop.f32.mrb[0].mxu0
    %v380 = vadd.f32 0.0, %v379
    %v381 = vpop.f32.mrb[0].mxu0
    %v382 = vpop.f32.mrb[0].mxu0
    %v383 = vadd.f32 0.0, %v382
    %v384 = vpop.f32.mrb[0].mxu0
    %385 = vmatprep.mubr.bf16.mxu0 0
    %386 = vmatmul.mubr.bf16.gmra.mrb[0].mxu0 %v236
    %v387 = vpop.f32.mrb[0].mxu0
    %v388 = vadd.f32 0.0, %v387
    %v389 = vpop.f32.mrb[0].mxu0
    %v390 = vpop.f32.mrb[0].mxu0
    %v391 = vadd.f32 0.0, %v390
    %v392 = vpop.f32.mrb[0].mxu0
    %393 = vmatprep.mubr.bf16.mxu0 0
    %394 = vmatmul.mubr.bf16.gmra.mrb[0].mxu0 %v239
    %v395 = vpop.f32.mrb[0].mxu0
    %v396 = vadd.f32 0.0, %v395
    %v397 = vpop.f32.mrb[0].mxu0
    %v398 = vpop.f32.mrb[0].mxu0
    %v399 = vadd.f32 0.0, %v398
    %v400 = vpop.f32.mrb[0].mxu0
    %401 = vdwg.mxu0
    %v402 = vpack.c.bf16 %v279, %v276
    %v403 = vpack.c.bf16 %v287, %v284
    %v404 = vpack.c.bf16 %v295, %v292
    %v405 = vpack.c.bf16 %v303, %v300
    %v406 = vpack.c.bf16 %v311, %v308
    %v407 = vpack.c.bf16 %v319, %v316
    %v408 = vpack.c.bf16 %v327, %v324
    %v409 = vpack.c.bf16 %v335, %v332
    %v410 = vpack.c.bf16 %v343, %v340
    %v411 = vpack.c.bf16 %v351, %v348
    %v412 = vpack.c.bf16 %v359, %v356
    %v413 = vpack.c.bf16 %v367, %v364
    %v414 = vpack.c.bf16 %v375, %v372
    %v415 = vpack.c.bf16 %v383, %v380
    %v416 = vpack.c.bf16 %v391, %v388
    %v417 = vpack.c.bf16 %v399, %v396
    %v418 = vld [vmem:[%s3] sm:$0x1]
    %v420 = vlaneseq
    %v421 = vshrl.u32 %v420, 7
    %v422 = vsub.s32 0, %v421
    %v423 = vrot.slane %v418, %v422
    %425 = vmatprep.subr.bf16.mxu0 0
    %426 = vmatpush1.bf16.msra.mxu0 %v402
    %427 = vmatprep.subr.bf16.mxu0 0
    %428 = vmatpush1.bf16.msra.mxu0 %v403
    %429 = vmatprep.subr.bf16.mxu0 0
    %430 = vmatpush1.bf16.msra.mxu0 %v404
    %431 = vmatprep.subr.bf16.mxu0 0
    %432 = vmatpush1.bf16.msra.mxu0 %v405
    %433 = vmatprep.subr.bf16.mxu0 0
    %434 = vmatpush1.bf16.msra.mxu0 %v406
    %435 = vmatprep.subr.bf16.mxu0 0
    %436 = vmatpush1.bf16.msra.mxu0 %v407
    %437 = vmatprep.subr.bf16.mxu0 0
    %438 = vmatpush1.bf16.msra.mxu0 %v408
    %439 = vmatprep.subr.bf16.mxu0 0
    %440 = vmatpush1.bf16.msra.mxu0 %v409
    %441 = vmatprep.subr.bf16.mxu0 0
    %442 = vmatpush1.bf16.msra.mxu0 %v410
    %443 = vmatprep.subr.bf16.mxu0 0
    %444 = vmatpush1.bf16.msra.mxu0 %v411
    %445 = vmatprep.subr.bf16.mxu0 0
    %446 = vmatpush1.bf16.msra.mxu0 %v412
    %447 = vmatprep.subr.bf16.mxu0 0
    %448 = vmatpush1.bf16.msra.mxu0 %v413
    %449 = vmatprep.subr.bf16.mxu0 0
    %450 = vmatpush1.bf16.msra.mxu0 %v414
    %451 = vmatprep.subr.bf16.mxu0 0
    %452 = vmatpush1.bf16.msra.mxu0 %v415
    %453 = vmatprep.subr.bf16.mxu0 0
    %454 = vmatpush1.bf16.msra.mxu0 %v416
    %455 = vmatprep.subr.bf16.mxu0 0
    %456 = vmatpush1.bf16.msra.mxu0 %v417
    %457 = vmatprep.mubr.bf16.mxu0 %v110
    %458 = vmatmul.mubr.bf16.gmra.mrb[0].mxu0 %v109
    %v459 = vpop.f32.mrb[0].mxu0
    %v460 = vadd.f32 %v423, %v459
    %v461 = vpop.f32.mrb[0].mxu0
    %v462 = vpop.f32.mrb[0].mxu0
    %v463 = vadd.f32 %v423, %v462
    %v464 = vpop.f32.mrb[0].mxu0
    %465 = vmatprep.mubr.bf16.mxu0 %v112
    %466 = vmatmul.mubr.bf16.gmra.mrb[0].mxu0 %v111
    %v467 = vpop.f32.mrb[0].mxu0
    %v468 = vadd.f32 %v423, %v467
    %v469 = vpop.f32.mrb[0].mxu0
    %v470 = vpop.f32.mrb[0].mxu0
    %v471 = vadd.f32 %v423, %v470
    %v472 = vpop.f32.mrb[0].mxu0
    %473 = vmatprep.mubr.bf16.mxu0 %v114
    %474 = vmatmul.mubr.bf16.gmra.mrb[0].mxu0 %v113
    %v475 = vpop.f32.mrb[0].mxu0
    %v476 = vadd.f32 %v423, %v475
    %v477 = vpop.f32.mrb[0].mxu0
    %v478 = vpop.f32.mrb[0].mxu0
    %v479 = vadd.f32 %v423, %v478
    %v480 = vpop.f32.mrb[0].mxu0
    %481 = vmatprep.mubr.bf16.mxu0 %v116
    %482 = vmatmul.mubr.bf16.gmra.mrb[0].mxu0 %v115
    %v483 = vpop.f32.mrb[0].mxu0
    %v484 = vadd.f32 %v423, %v483
    %v485 = vpop.f32.mrb[0].mxu0
    %v486 = vpop.f32.mrb[0].mxu0
    %v487 = vadd.f32 %v423, %v486
    %v488 = vpop.f32.mrb[0].mxu0
    %489 = vmatprep.mubr.bf16.mxu0 %v118
    %490 = vmatmul.mubr.bf16.gmra.mrb[0].mxu0 %v117
    %v491 = vpop.f32.mrb[0].mxu0
    %v492 = vadd.f32 %v423, %v491
    %v493 = vpop.f32.mrb[0].mxu0
    %v494 = vpop.f32.mrb[0].mxu0
    %v495 = vadd.f32 %v423, %v494
    %v496 = vpop.f32.mrb[0].mxu0
    %497 = vmatprep.mubr.bf16.mxu0 %v120
    %498 = vmatmul.mubr.bf16.gmra.mrb[0].mxu0 %v119
    %v499 = vpop.f32.mrb[0].mxu0
    %v500 = vadd.f32 %v423, %v499
    %v501 = vpop.f32.mrb[0].mxu0
    %v502 = vpop.f32.mrb[0].mxu0
    %v503 = vadd.f32 %v423, %v502
    %v504 = vpop.f32.mrb[0].mxu0
    %505 = vmatprep.mubr.bf16.mxu0 %v122
    %506 = vmatmul.mubr.bf16.gmra.mrb[0].mxu0 %v121
    %v507 = vpop.f32.mrb[0].mxu0
    %v508 = vadd.f32 %v423, %v507
    %v509 = vpop.f32.mrb[0].mxu0
    %v510 = vpop.f32.mrb[0].mxu0
    %v511 = vadd.f32 %v423, %v510
    %v512 = vpop.f32.mrb[0].mxu0
    %513 = vmatprep.mubr.bf16.mxu0 %v124
    %514 = vmatmul.mubr.bf16.gmra.mrb[0].mxu0 %v123
    %v515 = vpop.f32.mrb[0].mxu0
    %v516 = vadd.f32 %v423, %v515
    %v517 = vpop.f32.mrb[0].mxu0
    %v518 = vpop.f32.mrb[0].mxu0
    %v519 = vadd.f32 %v423, %v518
    %v520 = vpop.f32.mrb[0].mxu0
    %521 = vmatprep.mubr.bf16.mxu0 %v126
    %522 = vmatmul.mubr.bf16.gmra.mrb[0].mxu0 %v125
    %v523 = vpop.f32.mrb[0].mxu0
    %v524 = vadd.f32 %v423, %v523
    %v525 = vpop.f32.mrb[0].mxu0
    %v526 = vpop.f32.mrb[0].mxu0
    %v527 = vadd.f32 %v423, %v526
    %v528 = vpop.f32.mrb[0].mxu0
    %529 = vmatprep.mubr.bf16.mxu0 %v128
    %530 = vmatmul.mubr.bf16.gmra.mrb[0].mxu0 %v127
    %v531 = vpop.f32.mrb[0].mxu0
    %v532 = vadd.f32 %v423, %v531
    %v533 = vpop.f32.mrb[0].mxu0
    %v534 = vpop.f32.mrb[0].mxu0
    %v535 = vadd.f32 %v423, %v534
    %v536 = vpop.f32.mrb[0].mxu0
    %537 = vmatprep.mubr.bf16.mxu0 %v130
    %538 = vmatmul.mubr.bf16.gmra.mrb[0].mxu0 %v129
    %v539 = vpop.f32.mrb[0].mxu0
    %v540 = vadd.f32 %v423, %v539
    %v541 = vpop.f32.mrb[0].mxu0
    %v542 = vpop.f32.mrb[0].mxu0
    %v543 = vadd.f32 %v423, %v542
    %v544 = vpop.f32.mrb[0].mxu0
    %545 = vmatprep.mubr.bf16.mxu0 %v132
    %546 = vmatmul.mubr.bf16.gmra.mrb[0].mxu0 %v131
    %v547 = vpop.f32.mrb[0].mxu0
    %v548 = vadd.f32 %v423, %v547
    %v549 = vpop.f32.mrb[0].mxu0
    %v550 = vpop.f32.mrb[0].mxu0
    %v551 = vadd.f32 %v423, %v550
    %v552 = vpop.f32.mrb[0].mxu0
    %553 = vmatprep.mubr.bf16.mxu0 %v134
    %554 = vmatmul.mubr.bf16.gmra.mrb[0].mxu0 %v133
    %v555 = vpop.f32.mrb[0].mxu0
    %v556 = vadd.f32 %v423, %v555
    %v557 = vpop.f32.mrb[0].mxu0
    %v558 = vpop.f32.mrb[0].mxu0
    %v559 = vadd.f32 %v423, %v558
    %v560 = vpop.f32.mrb[0].mxu0
    %561 = vmatprep.mubr.bf16.mxu0 %v136
    %562 = vmatmul.mubr.bf16.gmra.mrb[0].mxu0 %v135
    %v563 = vpop.f32.mrb[0].mxu0
    %v564 = vadd.f32 %v423, %v563
    %v565 = vpop.f32.mrb[0].mxu0
    %v566 = vpop.f32.mrb[0].mxu0
    %v567 = vadd.f32 %v423, %v566
    %v568 = vpop.f32.mrb[0].mxu0
    %569 = vmatprep.mubr.bf16.mxu0 %v138
    %570 = vmatmul.mubr.bf16.gmra.mrb[0].mxu0 %v137
    %v571 = vpop.f32.mrb[0].mxu0
    %v572 = vadd.f32 %v423, %v571
    %v573 = vpop.f32.mrb[0].mxu0
    %v574 = vpop.f32.mrb[0].mxu0
    %v575 = vadd.f32 %v423, %v574
    %v576 = vpop.f32.mrb[0].mxu0
    %577 = vmatprep.mubr.bf16.mxu0 %v140
    %578 = vmatmul.mubr.bf16.gmra.mrb[0].mxu0 %v139
    %v579 = vpop.f32.mrb[0].mxu0
    %v580 = vadd.f32 %v423, %v579
    %v581 = vpop.f32.mrb[0].mxu0
    %v582 = vpop.f32.mrb[0].mxu0
    %v583 = vadd.f32 %v423, %v582
    %v584 = vpop.f32.mrb[0].mxu0
    %585 = vdwg.mxu0
    %v586 = vmax.f32 %v460, 0.0
    %v587 = vmax.f32 %v463, 0.0
    %v588 = vmax.f32 %v468, 0.0
    %v589 = vmax.f32 %v471, 0.0
    %v590 = vmax.f32 %v476, 0.0
    %v591 = vmax.f32 %v479, 0.0
    %v592 = vmax.f32 %v484, 0.0
    %v593 = vmax.f32 %v487, 0.0
    %v594 = vmax.f32 %v492, 0.0
    %v595 = vmax.f32 %v495, 0.0
    %v596 = vmax.f32 %v500, 0.0
    %v597 = vmax.f32 %v503, 0.0
    %v598 = vmax.f32 %v508, 0.0
    %v599 = vmax.f32 %v511, 0.0
    %v600 = vmax.f32 %v516, 0.0
    %v601 = vmax.f32 %v519, 0.0
    %v602 = vmax.f32 %v524, 0.0
    %v603 = vmax.f32 %v527, 0.0
    %v604 = vmax.f32 %v532, 0.0
    %v605 = vmax.f32 %v535, 0.0
    %v606 = vmax.f32 %v540, 0.0
    %v607 = vmax.f32 %v543, 0.0
    %v608 = vmax.f32 %v548, 0.0
    %v609 = vmax.f32 %v551, 0.0
    %v610 = vmax.f32 %v556, 0.0
    %v611 = vmax.f32 %v559, 0.0
    %v612 = vmax.f32 %v564, 0.0
    %v613 = vmax.f32 %v567, 0.0
    %v614 = vmax.f32 %v572, 0.0
    %v615 = vmax.f32 %v575, 0.0
    %v616 = vmax.f32 %v580, 0.0
    %v617 = vmax.f32 %v583, 0.0
    %v618 = vpack.c.bf16 %v587, %v586
    %v619 = vpack.c.bf16 %v589, %v588
    %v620 = vpack.c.bf16 %v591, %v590
    %v621 = vpack.c.bf16 %v593, %v592
    %v622 = vpack.c.bf16 %v595, %v594
    %v623 = vpack.c.bf16 %v597, %v596
    %v624 = vpack.c.bf16 %v599, %v598
    %v625 = vpack.c.bf16 %v601, %v600
    %v626 = vpack.c.bf16 %v603, %v602
    %v627 = vpack.c.bf16 %v605, %v604
    %v628 = vpack.c.bf16 %v607, %v606
    %v629 = vpack.c.bf16 %v609, %v608
    %v630 = vpack.c.bf16 %v611, %v610
    %v631 = vpack.c.bf16 %v613, %v612
    %v632 = vpack.c.bf16 %v615, %v614
    %v633 = vpack.c.bf16 %v617, %v616
    %v634 = vld [vmem:[%s4] sm:$0xff]
    %v635 = vld [vmem:[%s4 + $0x8] sm:$0xff]
    %v636 = vld [vmem:[%s4 + $0x10] sm:$0xff]
    %v637 = vld [vmem:[%s4 + $0x18] sm:$0xff]
    %v638 = vpack.c.bf16 %v635, %v634
    %v639 = vpack.c.bf16 %v637, %v636
    %vm640 = vcmask 261120
    %v642 = vsel %vm640, %v618, 0
    %v645 = vsel %vm640, %v619, 0
    %v648 = vsel %vm640, %v620, 0
    %v651 = vsel %vm640, %v621, 0
    %v654 = vsel %vm640, %v622, 0
    %v657 = vsel %vm640, %v623, 0
    %v660 = vsel %vm640, %v624, 0
    %v663 = vsel %vm640, %v625, 0
    %v666 = vsel %vm640, %v626, 0
    %v669 = vsel %vm640, %v627, 0
    %v672 = vsel %vm640, %v628, 0
    %v675 = vsel %vm640, %v629, 0
    %v678 = vsel %vm640, %v630, 0
    %v681 = vsel %vm640, %v631, 0
    %v684 = vsel %vm640, %v632, 0
    %v687 = vsel %vm640, %v633, 0
    %689 = vmatprep.subr.bf16.mxu0 0
    %690 = vmatpush1.bf16.msra.mxu0 %v638
    %691 = vmatprep.subr.bf16.mxu0 0
    %692 = vmatpush1.bf16.msra.mxu0 %v639
    %693 = vmatprep.subr.bf16.mxu0 0
    %694 = vmatpush1.bf16.msra.mxu0 0
    %695 = vmatprep.subr.bf16.mxu0 0
    %696 = vmatpush1.bf16.msra.mxu0 0
    %697 = vmatprep.subr.bf16.mxu0 0
    %698 = vmatpush1.bf16.msra.mxu0 0
    %699 = vmatprep.subr.bf16.mxu0 0
    %700 = vmatpush1.bf16.msra.mxu0 0
    %701 = vmatprep.subr.bf16.mxu0 0
    %702 = vmatpush1.bf16.msra.mxu0 0
    %703 = vmatprep.subr.bf16.mxu0 0
    %704 = vmatpush1.bf16.msra.mxu0 0
    %705 = vmatprep.subr.bf16.mxu0 0
    %706 = vmatpush1.bf16.msra.mxu0 0
    %707 = vmatprep.subr.bf16.mxu0 0
    %708 = vmatpush1.bf16.msra.mxu0 0
    %709 = vmatprep.subr.bf16.mxu0 0
    %710 = vmatpush1.bf16.msra.mxu0 0
    %711 = vmatprep.subr.bf16.mxu0 0
    %712 = vmatpush1.bf16.msra.mxu0 0
    %713 = vmatprep.subr.bf16.mxu0 0
    %714 = vmatpush1.bf16.msra.mxu0 0
    %715 = vmatprep.subr.bf16.mxu0 0
    %716 = vmatpush1.bf16.msra.mxu0 0
    %717 = vmatprep.subr.bf16.mxu0 0
    %718 = vmatpush1.bf16.msra.mxu0 0
    %719 = vmatprep.subr.bf16.mxu0 0
    %720 = vmatpush1.bf16.msra.mxu0 0
    %721 = vmatprep.mubr.bf16.mxu0 0
    %722 = vmatmul.mubr.bf16.gmra.mrb[0].mxu0 %v642
    %v723 = vpop.f32.mrb[0].mxu0
    %v724 = vadd.f32 0.0, %v723
    %v725 = vpop.f32.mrb[0].mxu0
    %v726 = vpop.f32.mrb[0].mxu0
    %v727 = vadd.f32 0.0, %v726
    %v728 = vpop.f32.mrb[0].mxu0
    %729 = vmatprep.mubr.bf16.mxu0 0
    %730 = vmatmul.mubr.bf16.gmra.mrb[0].mxu0 %v645
    %v731 = vpop.f32.mrb[0].mxu0
    %v732 = vadd.f32 0.0, %v731
    %v733 = vpop.f32.mrb[0].mxu0
    %v734 = vpop.f32.mrb[0].mxu0
    %v735 = vadd.f32 0.0, %v734
    %v736 = vpop.f32.mrb[0].mxu0
    %737 = vmatprep.mubr.bf16.mxu0 0
    %738 = vmatmul.mubr.bf16.gmra.mrb[0].mxu0 %v648
    %v739 = vpop.f32.mrb[0].mxu0
    %v740 = vadd.f32 0.0, %v739
    %v741 = vpop.f32.mrb[0].mxu0
    %v742 = vpop.f32.mrb[0].mxu0
    %v743 = vadd.f32 0.0, %v742
    %v744 = vpop.f32.mrb[0].mxu0
    %745 = vmatprep.mubr.bf16.mxu0 0
    %746 = vmatmul.mubr.bf16.gmra.mrb[0].mxu0 %v651
    %v747 = vpop.f32.mrb[0].mxu0
    %v748 = vadd.f32 0.0, %v747
    %v749 = vpop.f32.mrb[0].mxu0
    %v750 = vpop.f32.mrb[0].mxu0
    %v751 = vadd.f32 0.0, %v750
    %v752 = vpop.f32.mrb[0].mxu0
    %753 = vmatprep.mubr.bf16.mxu0 0
    %754 = vmatmul.mubr.bf16.gmra.mrb[0].mxu0 %v654
    %v755 = vpop.f32.mrb[0].mxu0
    %v756 = vadd.f32 0.0, %v755
    %v757 = vpop.f32.mrb[0].mxu0
    %v758 = vpop.f32.mrb[0].mxu0
    %v759 = vadd.f32 0.0, %v758
    %v760 = vpop.f32.mrb[0].mxu0
    %761 = vmatprep.mubr.bf16.mxu0 0
    %762 = vmatmul.mubr.bf16.gmra.mrb[0].mxu0 %v657
    %v763 = vpop.f32.mrb[0].mxu0
    %v764 = vadd.f32 0.0, %v763
    %v765 = vpop.f32.mrb[0].mxu0
    %v766 = vpop.f32.mrb[0].mxu0
    %v767 = vadd.f32 0.0, %v766
    %v768 = vpop.f32.mrb[0].mxu0
    %769 = vmatprep.mubr.bf16.mxu0 0
    %770 = vmatmul.mubr.bf16.gmra.mrb[0].mxu0 %v660
    %v771 = vpop.f32.mrb[0].mxu0
    %v772 = vadd.f32 0.0, %v771
    %v773 = vpop.f32.mrb[0].mxu0
    %v774 = vpop.f32.mrb[0].mxu0
    %v775 = vadd.f32 0.0, %v774
    %v776 = vpop.f32.mrb[0].mxu0
    %777 = vmatprep.mubr.bf16.mxu0 0
    %778 = vmatmul.mubr.bf16.gmra.mrb[0].mxu0 %v663
    %v779 = vpop.f32.mrb[0].mxu0
    %v780 = vadd.f32 0.0, %v779
    %v781 = vpop.f32.mrb[0].mxu0
    %v782 = vpop.f32.mrb[0].mxu0
    %v783 = vadd.f32 0.0, %v782
    %v784 = vpop.f32.mrb[0].mxu0
    %785 = vmatprep.mubr.bf16.mxu0 0
    %786 = vmatmul.mubr.bf16.gmra.mrb[0].mxu0 %v666
    %v787 = vpop.f32.mrb[0].mxu0
    %v788 = vadd.f32 0.0, %v787
    %v789 = vpop.f32.mrb[0].mxu0
    %v790 = vpop.f32.mrb[0].mxu0
    %v791 = vadd.f32 0.0, %v790
    %v792 = vpop.f32.mrb[0].mxu0
    %793 = vmatprep.mubr.bf16.mxu0 0
    %794 = vmatmul.mubr.bf16.gmra.mrb[0].mxu0 %v669
    %v795 = vpop.f32.mrb[0].mxu0
    %v796 = vadd.f32 0.0, %v795
    %v797 = vpop.f32.mrb[0].mxu0
    %v798 = vpop.f32.mrb[0].mxu0
    %v799 = vadd.f32 0.0, %v798
    %v800 = vpop.f32.mrb[0].mxu0
    %801 = vmatprep.mubr.bf16.mxu0 0
    %802 = vmatmul.mubr.bf16.gmra.mrb[0].mxu0 %v672
    %v803 = vpop.f32.mrb[0].mxu0
    %v804 = vadd.f32 0.0, %v803
    %v805 = vpop.f32.mrb[0].mxu0
    %v806 = vpop.f32.mrb[0].mxu0
    %v807 = vadd.f32 0.0, %v806
    %v808 = vpop.f32.mrb[0].mxu0
    %809 = vmatprep.mubr.bf16.mxu0 0
    %810 = vmatmul.mubr.bf16.gmra.mrb[0].mxu0 %v675
    %v811 = vpop.f32.mrb[0].mxu0
    %v812 = vadd.f32 0.0, %v811
    %v813 = vpop.f32.mrb[0].mxu0
    %v814 = vpop.f32.mrb[0].mxu0
    %v815 = vadd.f32 0.0, %v814
    %v816 = vpop.f32.mrb[0].mxu0
    %817 = vmatprep.mubr.bf16.mxu0 0
    %818 = vmatmul.mubr.bf16.gmra.mrb[0].mxu0 %v678
    %v819 = vpop.f32.mrb[0].mxu0
    %v820 = vadd.f32 0.0, %v819
    %v821 = vpop.f32.mrb[0].mxu0
    %v822 = vpop.f32.mrb[0].mxu0
    %v823 = vadd.f32 0.0, %v822
    %v824 = vpop.f32.mrb[0].mxu0
    %825 = vmatprep.mubr.bf16.mxu0 0
    %826 = vmatmul.mubr.bf16.gmra.mrb[0].mxu0 %v681
    %v827 = vpop.f32.mrb[0].mxu0
    %v828 = vadd.f32 0.0, %v827
    %v829 = vpop.f32.mrb[0].mxu0
    %v830 = vpop.f32.mrb[0].mxu0
    %v831 = vadd.f32 0.0, %v830
    %v832 = vpop.f32.mrb[0].mxu0
    %833 = vmatprep.mubr.bf16.mxu0 0
    %834 = vmatmul.mubr.bf16.gmra.mrb[0].mxu0 %v684
    %v835 = vpop.f32.mrb[0].mxu0
    %v836 = vadd.f32 0.0, %v835
    %v837 = vpop.f32.mrb[0].mxu0
    %v838 = vpop.f32.mrb[0].mxu0
    %v839 = vadd.f32 0.0, %v838
    %v840 = vpop.f32.mrb[0].mxu0
    %841 = vmatprep.mubr.bf16.mxu0 0
    %842 = vmatmul.mubr.bf16.gmra.mrb[0].mxu0 %v687
    %v843 = vpop.f32.mrb[0].mxu0
    %v844 = vadd.f32 0.0, %v843
    %v845 = vpop.f32.mrb[0].mxu0
    %v846 = vpop.f32.mrb[0].mxu0
    %v847 = vadd.f32 0.0, %v846
    %v848 = vpop.f32.mrb[0].mxu0
    %849 = vdwg.mxu0
    %v850 = vpack.c.bf16 %v727, %v724
    %v851 = vpack.c.bf16 %v735, %v732
    %v852 = vpack.c.bf16 %v743, %v740
    %v853 = vpack.c.bf16 %v751, %v748
    %v854 = vpack.c.bf16 %v759, %v756
    %v855 = vpack.c.bf16 %v767, %v764
    %v856 = vpack.c.bf16 %v775, %v772
    %v857 = vpack.c.bf16 %v783, %v780
    %v858 = vpack.c.bf16 %v791, %v788
    %v859 = vpack.c.bf16 %v799, %v796
    %v860 = vpack.c.bf16 %v807, %v804
    %v861 = vpack.c.bf16 %v815, %v812
    %v862 = vpack.c.bf16 %v823, %v820
    %v863 = vpack.c.bf16 %v831, %v828
    %v864 = vpack.c.bf16 %v839, %v836
    %v865 = vpack.c.bf16 %v847, %v844
    %v866 = vld [vmem:[%s5] sm:$0x1]
    %v868 = vlaneseq
    %v869 = vshrl.u32 %v868, 7
    %v870 = vsub.s32 0, %v869
    %v871 = vrot.slane %v866, %v870
    %873 = vmatprep.subr.bf16.mxu0 0
    %874 = vmatpush1.bf16.msra.mxu0 %v850
    %875 = vmatprep.subr.bf16.mxu0 0
    %876 = vmatpush1.bf16.msra.mxu0 %v851
    %877 = vmatprep.subr.bf16.mxu0 0
    %878 = vmatpush1.bf16.msra.mxu0 %v852
    %879 = vmatprep.subr.bf16.mxu0 0
    %880 = vmatpush1.bf16.msra.mxu0 %v853
    %881 = vmatprep.subr.bf16.mxu0 0
    %882 = vmatpush1.bf16.msra.mxu0 %v854
    %883 = vmatprep.subr.bf16.mxu0 0
    %884 = vmatpush1.bf16.msra.mxu0 %v855
    %885 = vmatprep.subr.bf16.mxu0 0
    %886 = vmatpush1.bf16.msra.mxu0 %v856
    %887 = vmatprep.subr.bf16.mxu0 0
    %888 = vmatpush1.bf16.msra.mxu0 %v857
    %889 = vmatprep.subr.bf16.mxu0 0
    %890 = vmatpush1.bf16.msra.mxu0 %v858
    %891 = vmatprep.subr.bf16.mxu0 0
    %892 = vmatpush1.bf16.msra.mxu0 %v859
    %893 = vmatprep.subr.bf16.mxu0 0
    %894 = vmatpush1.bf16.msra.mxu0 %v860
    %895 = vmatprep.subr.bf16.mxu0 0
    %896 = vmatpush1.bf16.msra.mxu0 %v861
    %897 = vmatprep.subr.bf16.mxu0 0
    %898 = vmatpush1.bf16.msra.mxu0 %v862
    %899 = vmatprep.subr.bf16.mxu0 0
    %900 = vmatpush1.bf16.msra.mxu0 %v863
    %901 = vmatprep.subr.bf16.mxu0 0
    %902 = vmatpush1.bf16.msra.mxu0 %v864
    %903 = vmatprep.subr.bf16.mxu0 0
    %904 = vmatpush1.bf16.msra.mxu0 %v865
    %905 = vmatprep.mubr.bf16.mxu0 %v110
    %906 = vmatmul.mubr.bf16.gmra.mrb[0].mxu0 %v109
    %v907 = vpop.f32.mrb[0].mxu0
    %v908 = vadd.f32 %v871, %v907
    %v909 = vpop.f32.mrb[0].mxu0
    %v910 = vpop.f32.mrb[0].mxu0
    %v911 = vadd.f32 %v871, %v910
    %v912 = vpop.f32.mrb[0].mxu0
    %913 = vmatprep.mubr.bf16.mxu0 %v112
    %914 = vmatmul.mubr.bf16.gmra.mrb[0].mxu0 %v111
    %v915 = vpop.f32.mrb[0].mxu0
    %v916 = vadd.f32 %v871, %v915
    %v917 = vpop.f32.mrb[0].mxu0
    %v918 = vpop.f32.mrb[0].mxu0
    %v919 = vadd.f32 %v871, %v918
    %v920 = vpop.f32.mrb[0].mxu0
    %921 = vmatprep.mubr.bf16.mxu0 %v114
    %922 = vmatmul.mubr.bf16.gmra.mrb[0].mxu0 %v113
    %v923 = vpop.f32.mrb[0].mxu0
    %v924 = vadd.f32 %v871, %v923
    %v925 = vpop.f32.mrb[0].mxu0
    %v926 = vpop.f32.mrb[0].mxu0
    %v927 = vadd.f32 %v871, %v926
    %v928 = vpop.f32.mrb[0].mxu0
    %929 = vmatprep.mubr.bf16.mxu0 %v116
    %930 = vmatmul.mubr.bf16.gmra.mrb[0].mxu0 %v115
    %v931 = vpop.f32.mrb[0].mxu0
    %v932 = vadd.f32 %v871, %v931
    %v933 = vpop.f32.mrb[0].mxu0
    %v934 = vpop.f32.mrb[0].mxu0
    %v935 = vadd.f32 %v871, %v934
    %v936 = vpop.f32.mrb[0].mxu0
    %937 = vmatprep.mubr.bf16.mxu0 %v118
    %938 = vmatmul.mubr.bf16.gmra.mrb[0].mxu0 %v117
    %v939 = vpop.f32.mrb[0].mxu0
    %v940 = vadd.f32 %v871, %v939
    %v941 = vpop.f32.mrb[0].mxu0
    %v942 = vpop.f32.mrb[0].mxu0
    %v943 = vadd.f32 %v871, %v942
    %v944 = vpop.f32.mrb[0].mxu0
    %945 = vmatprep.mubr.bf16.mxu0 %v120
    %946 = vmatmul.mubr.bf16.gmra.mrb[0].mxu0 %v119
    %v947 = vpop.f32.mrb[0].mxu0
    %v948 = vadd.f32 %v871, %v947
    %v949 = vpop.f32.mrb[0].mxu0
    %v950 = vpop.f32.mrb[0].mxu0
    %v951 = vadd.f32 %v871, %v950
    %v952 = vpop.f32.mrb[0].mxu0
    %953 = vmatprep.mubr.bf16.mxu0 %v122
    %954 = vmatmul.mubr.bf16.gmra.mrb[0].mxu0 %v121
    %v955 = vpop.f32.mrb[0].mxu0
    %v956 = vadd.f32 %v871, %v955
    %v957 = vpop.f32.mrb[0].mxu0
    %v958 = vpop.f32.mrb[0].mxu0
    %v959 = vadd.f32 %v871, %v958
    %v960 = vpop.f32.mrb[0].mxu0
    %961 = vmatprep.mubr.bf16.mxu0 %v124
    %962 = vmatmul.mubr.bf16.gmra.mrb[0].mxu0 %v123
    %v963 = vpop.f32.mrb[0].mxu0
    %v964 = vadd.f32 %v871, %v963
    %v965 = vpop.f32.mrb[0].mxu0
    %v966 = vpop.f32.mrb[0].mxu0
    %v967 = vadd.f32 %v871, %v966
    %v968 = vpop.f32.mrb[0].mxu0
    %969 = vmatprep.mubr.bf16.mxu0 %v126
    %970 = vmatmul.mubr.bf16.gmra.mrb[0].mxu0 %v125
    %v971 = vpop.f32.mrb[0].mxu0
    %v972 = vadd.f32 %v871, %v971
    %v973 = vpop.f32.mrb[0].mxu0
    %v974 = vpop.f32.mrb[0].mxu0
    %v975 = vadd.f32 %v871, %v974
    %v976 = vpop.f32.mrb[0].mxu0
    %977 = vmatprep.mubr.bf16.mxu0 %v128
    %978 = vmatmul.mubr.bf16.gmra.mrb[0].mxu0 %v127
    %v979 = vpop.f32.mrb[0].mxu0
    %v980 = vadd.f32 %v871, %v979
    %v981 = vpop.f32.mrb[0].mxu0
    %v982 = vpop.f32.mrb[0].mxu0
    %v983 = vadd.f32 %v871, %v982
    %v984 = vpop.f32.mrb[0].mxu0
    %985 = vmatprep.mubr.bf16.mxu0 %v130
    %986 = vmatmul.mubr.bf16.gmra.mrb[0].mxu0 %v129
    %v987 = vpop.f32.mrb[0].mxu0
    %v988 = vadd.f32 %v871, %v987
    %v989 = vpop.f32.mrb[0].mxu0
    %v990 = vpop.f32.mrb[0].mxu0
    %v991 = vadd.f32 %v871, %v990
    %v992 = vpop.f32.mrb[0].mxu0
    %993 = vmatprep.mubr.bf16.mxu0 %v132
    %994 = vmatmul.mubr.bf16.gmra.mrb[0].mxu0 %v131
    %v995 = vpop.f32.mrb[0].mxu0
    %v996 = vadd.f32 %v871, %v995
    %v997 = vpop.f32.mrb[0].mxu0
    %v998 = vpop.f32.mrb[0].mxu0
    %v999 = vadd.f32 %v871, %v998
    %v1000 = vpop.f32.mrb[0].mxu0
    %1001 = vmatprep.mubr.bf16.mxu0 %v134
    %1002 = vmatmul.mubr.bf16.gmra.mrb[0].mxu0 %v133
    %v1003 = vpop.f32.mrb[0].mxu0
    %v1004 = vadd.f32 %v871, %v1003
    %v1005 = vpop.f32.mrb[0].mxu0
    %v1006 = vpop.f32.mrb[0].mxu0
    %v1007 = vadd.f32 %v871, %v1006
    %v1008 = vpop.f32.mrb[0].mxu0
    %1009 = vmatprep.mubr.bf16.mxu0 %v136
    %1010 = vmatmul.mubr.bf16.gmra.mrb[0].mxu0 %v135
    %v1011 = vpop.f32.mrb[0].mxu0
    %v1012 = vadd.f32 %v871, %v1011
    %v1013 = vpop.f32.mrb[0].mxu0
    %v1014 = vpop.f32.mrb[0].mxu0
    %v1015 = vadd.f32 %v871, %v1014
    %v1016 = vpop.f32.mrb[0].mxu0
    %1017 = vmatprep.mubr.bf16.mxu0 %v138
    %1018 = vmatmul.mubr.bf16.gmra.mrb[0].mxu0 %v137
    %v1019 = vpop.f32.mrb[0].mxu0
    %v1020 = vadd.f32 %v871, %v1019
    %v1021 = vpop.f32.mrb[0].mxu0
    %v1022 = vpop.f32.mrb[0].mxu0
    %v1023 = vadd.f32 %v871, %v1022
    %v1024 = vpop.f32.mrb[0].mxu0
    %1025 = vmatprep.mubr.bf16.mxu0 %v140
    %1026 = vmatmul.mubr.bf16.gmra.mrb[0].mxu0 %v139
    %v1027 = vpop.f32.mrb[0].mxu0
    %v1028 = vadd.f32 %v871, %v1027
    %v1029 = vpop.f32.mrb[0].mxu0
    %v1030 = vpop.f32.mrb[0].mxu0
    %v1031 = vadd.f32 %v871, %v1030
    %v1032 = vpop.f32.mrb[0].mxu0
    %1033 = vdwg.mxu0
    %v1034 = vmax.f32 %v908, 0.0
    %v1035 = vmax.f32 %v911, 0.0
    %v1036 = vmax.f32 %v916, 0.0
    %v1037 = vmax.f32 %v919, 0.0
    %v1038 = vmax.f32 %v924, 0.0
    %v1039 = vmax.f32 %v927, 0.0
    %v1040 = vmax.f32 %v932, 0.0
    %v1041 = vmax.f32 %v935, 0.0
    %v1042 = vmax.f32 %v940, 0.0
    %v1043 = vmax.f32 %v943, 0.0
    %v1044 = vmax.f32 %v948, 0.0
    %v1045 = vmax.f32 %v951, 0.0
    %v1046 = vmax.f32 %v956, 0.0
    %v1047 = vmax.f32 %v959, 0.0
    %v1048 = vmax.f32 %v964, 0.0
    %v1049 = vmax.f32 %v967, 0.0
    %v1050 = vmax.f32 %v972, 0.0
    %v1051 = vmax.f32 %v975, 0.0
    %v1052 = vmax.f32 %v980, 0.0
    %v1053 = vmax.f32 %v983, 0.0
    %v1054 = vmax.f32 %v988, 0.0
    %v1055 = vmax.f32 %v991, 0.0
    %v1056 = vmax.f32 %v996, 0.0
    %v1057 = vmax.f32 %v999, 0.0
    %v1058 = vmax.f32 %v1004, 0.0
    %v1059 = vmax.f32 %v1007, 0.0
    %v1060 = vmax.f32 %v1012, 0.0
    %v1061 = vmax.f32 %v1015, 0.0
    %v1062 = vmax.f32 %v1020, 0.0
    %v1063 = vmax.f32 %v1023, 0.0
    %v1064 = vmax.f32 %v1028, 0.0
    %v1065 = vmax.f32 %v1031, 0.0
    %v1066 = vpack.c.bf16 %v1035, %v1034
    %v1067 = vpack.c.bf16 %v1037, %v1036
    %v1068 = vpack.c.bf16 %v1039, %v1038
    %v1069 = vpack.c.bf16 %v1041, %v1040
    %v1070 = vpack.c.bf16 %v1043, %v1042
    %v1071 = vpack.c.bf16 %v1045, %v1044
    %v1072 = vpack.c.bf16 %v1047, %v1046
    %v1073 = vpack.c.bf16 %v1049, %v1048
    %v1074 = vpack.c.bf16 %v1051, %v1050
    %v1075 = vpack.c.bf16 %v1053, %v1052
    %v1076 = vpack.c.bf16 %v1055, %v1054
    %v1077 = vpack.c.bf16 %v1057, %v1056
    %v1078 = vpack.c.bf16 %v1059, %v1058
    %v1079 = vpack.c.bf16 %v1061, %v1060
    %v1080 = vpack.c.bf16 %v1063, %v1062
    %v1081 = vpack.c.bf16 %v1065, %v1064
    %v1082 = vld [vmem:[%s6] sm:$0xff]
    %v1083 = vld [vmem:[%s6 + $0x8] sm:$0xff]
    %v1084 = vld [vmem:[%s6 + $0x10] sm:$0xff]
    %v1085 = vld [vmem:[%s6 + $0x18] sm:$0xff]
    %v1086 = vpack.c.bf16 %v1083, %v1082
    %v1087 = vpack.c.bf16 %v1085, %v1084
    %v1088 = vld [vmem:[%s7] sm:$0x1]
    %v1090 = vlaneseq
    %v1091 = vshrl.u32 %v1090, 7
    %v1092 = vsub.s32 0, %v1091
    %v1093 = vrot.slane %v1088, %v1092
    %v1096 = vsel %vm640, %v1066, 0
    %v1099 = vsel %vm640, %v1067, 0
    %v1102 = vsel %vm640, %v1068, 0
    %v1105 = vsel %vm640, %v1069, 0
    %v1108 = vsel %vm640, %v1070, 0
    %v1111 = vsel %vm640, %v1071, 0
    %v1114 = vsel %vm640, %v1072, 0
    %v1117 = vsel %vm640, %v1073, 0
    %v1120 = vsel %vm640, %v1074, 0
    %v1123 = vsel %vm640, %v1075, 0
    %v1126 = vsel %vm640, %v1076, 0
    %v1129 = vsel %vm640, %v1077, 0
    %v1132 = vsel %vm640, %v1078, 0
    %v1135 = vsel %vm640, %v1079, 0
    %v1138 = vsel %vm640, %v1080, 0
    %v1141 = vsel %vm640, %v1081, 0
    %1143 = vmatprep.subr.bf16.mxu0 0
    %1144 = vmatpush1.bf16.msra.mxu0 %v1086
    %1145 = vmatprep.subr.bf16.mxu0 0
    %1146 = vmatpush1.bf16.msra.mxu0 %v1087
    %1147 = vmatprep.subr.bf16.mxu0 0
    %1148 = vmatpush1.bf16.msra.mxu0 0
    %1149 = vmatprep.subr.bf16.mxu0 0
    %1150 = vmatpush1.bf16.msra.mxu0 0
    %1151 = vmatprep.subr.bf16.mxu0 0
    %1152 = vmatpush1.bf16.msra.mxu0 0
    %1153 = vmatprep.subr.bf16.mxu0 0
    %1154 = vmatpush1.bf16.msra.mxu0 0
    %1155 = vmatprep.subr.bf16.mxu0 0
    %1156 = vmatpush1.bf16.msra.mxu0 0
    %1157 = vmatprep.subr.bf16.mxu0 0
    %1158 = vmatpush1.bf16.msra.mxu0 0
    %1159 = vmatprep.subr.bf16.mxu0 0
    %1160 = vmatpush1.bf16.msra.mxu0 0
    %1161 = vmatprep.subr.bf16.mxu0 0
    %1162 = vmatpush1.bf16.msra.mxu0 0
    %1163 = vmatprep.subr.bf16.mxu0 0
    %1164 = vmatpush1.bf16.msra.mxu0 0
    %1165 = vmatprep.subr.bf16.mxu0 0
    %1166 = vmatpush1.bf16.msra.mxu0 0
    %1167 = vmatprep.subr.bf16.mxu0 0
    %1168 = vmatpush1.bf16.msra.mxu0 0
    %1169 = vmatprep.subr.bf16.mxu0 0
    %1170 = vmatpush1.bf16.msra.mxu0 0
    %1171 = vmatprep.subr.bf16.mxu0 0
    %1172 = vmatpush1.bf16.msra.mxu0 0
    %1173 = vmatprep.subr.bf16.mxu0 0
    %1174 = vmatpush1.bf16.msra.mxu0 0
    %1175 = vmatprep.mubr.bf16.mxu0 0
    %1176 = vmatmul.mubr.bf16.gmra.mrb[0].mxu0 %v1096
    %v1177 = vpop.f32.mrb[0].mxu0
    %v1178 = vadd.f32 %v1093, %v1177
    %v1179 = vpop.f32.mrb[0].mxu0
    %v1180 = vpop.f32.mrb[0].mxu0
    %v1181 = vadd.f32 %v1093, %v1180
    %v1182 = vpop.f32.mrb[0].mxu0
    %1183 = vmatprep.mubr.bf16.mxu0 0
    %1184 = vmatmul.mubr.bf16.gmra.mrb[0].mxu0 %v1099
    %v1185 = vpop.f32.mrb[0].mxu0
    %v1186 = vadd.f32 %v1093, %v1185
    %v1187 = vpop.f32.mrb[0].mxu0
    %v1188 = vpop.f32.mrb[0].mxu0
    %v1189 = vadd.f32 %v1093, %v1188
    %v1190 = vpop.f32.mrb[0].mxu0
    %1191 = vmatprep.mubr.bf16.mxu0 0
    %1192 = vmatmul.mubr.bf16.gmra.mrb[0].mxu0 %v1102
    %v1193 = vpop.f32.mrb[0].mxu0
    %v1194 = vadd.f32 %v1093, %v1193
    %v1195 = vpop.f32.mrb[0].mxu0
    %v1196 = vpop.f32.mrb[0].mxu0
    %v1197 = vadd.f32 %v1093, %v1196
    %v1198 = vpop.f32.mrb[0].mxu0
    %1199 = vmatprep.mubr.bf16.mxu0 0
    %1200 = vmatmul.mubr.bf16.gmra.mrb[0].mxu0 %v1105
    %v1201 = vpop.f32.mrb[0].mxu0
    %v1202 = vadd.f32 %v1093, %v1201
    %v1203 = vpop.f32.mrb[0].mxu0
    %v1204 = vpop.f32.mrb[0].mxu0
    %v1205 = vadd.f32 %v1093, %v1204
    %v1206 = vpop.f32.mrb[0].mxu0
    %1207 = vmatprep.mubr.bf16.mxu0 0
    %1208 = vmatmul.mubr.bf16.gmra.mrb[0].mxu0 %v1108
    %v1209 = vpop.f32.mrb[0].mxu0
    %v1210 = vadd.f32 %v1093, %v1209
    %v1211 = vpop.f32.mrb[0].mxu0
    %v1212 = vpop.f32.mrb[0].mxu0
    %v1213 = vadd.f32 %v1093, %v1212
    %v1214 = vpop.f32.mrb[0].mxu0
    %1215 = vmatprep.mubr.bf16.mxu0 0
    %1216 = vmatmul.mubr.bf16.gmra.mrb[0].mxu0 %v1111
    %v1217 = vpop.f32.mrb[0].mxu0
    %v1218 = vadd.f32 %v1093, %v1217
    %v1219 = vpop.f32.mrb[0].mxu0
    %v1220 = vpop.f32.mrb[0].mxu0
    %v1221 = vadd.f32 %v1093, %v1220
    %v1222 = vpop.f32.mrb[0].mxu0
    %1223 = vmatprep.mubr.bf16.mxu0 0
    %1224 = vmatmul.mubr.bf16.gmra.mrb[0].mxu0 %v1114
    %v1225 = vpop.f32.mrb[0].mxu0
    %v1226 = vadd.f32 %v1093, %v1225
    %v1227 = vpop.f32.mrb[0].mxu0
    %v1228 = vpop.f32.mrb[0].mxu0
    %v1229 = vadd.f32 %v1093, %v1228
    %v1230 = vpop.f32.mrb[0].mxu0
    %1231 = vmatprep.mubr.bf16.mxu0 0
    %1232 = vmatmul.mubr.bf16.gmra.mrb[0].mxu0 %v1117
    %v1233 = vpop.f32.mrb[0].mxu0
    %v1234 = vadd.f32 %v1093, %v1233
    %v1235 = vpop.f32.mrb[0].mxu0
    %v1236 = vpop.f32.mrb[0].mxu0
    %v1237 = vadd.f32 %v1093, %v1236
    %v1238 = vpop.f32.mrb[0].mxu0
    %1239 = vmatprep.mubr.bf16.mxu0 0
    %1240 = vmatmul.mubr.bf16.gmra.mrb[0].mxu0 %v1120
    %v1241 = vpop.f32.mrb[0].mxu0
    %v1242 = vadd.f32 %v1093, %v1241
    %v1243 = vpop.f32.mrb[0].mxu0
    %v1244 = vpop.f32.mrb[0].mxu0
    %v1245 = vadd.f32 %v1093, %v1244
    %v1246 = vpop.f32.mrb[0].mxu0
    %1247 = vmatprep.mubr.bf16.mxu0 0
    %1248 = vmatmul.mubr.bf16.gmra.mrb[0].mxu0 %v1123
    %v1249 = vpop.f32.mrb[0].mxu0
    %v1250 = vadd.f32 %v1093, %v1249
    %v1251 = vpop.f32.mrb[0].mxu0
    %v1252 = vpop.f32.mrb[0].mxu0
    %v1253 = vadd.f32 %v1093, %v1252
    %v1254 = vpop.f32.mrb[0].mxu0
    %1255 = vmatprep.mubr.bf16.mxu0 0
    %1256 = vmatmul.mubr.bf16.gmra.mrb[0].mxu0 %v1126
    %v1257 = vpop.f32.mrb[0].mxu0
    %v1258 = vadd.f32 %v1093, %v1257
    %v1259 = vpop.f32.mrb[0].mxu0
    %v1260 = vpop.f32.mrb[0].mxu0
    %v1261 = vadd.f32 %v1093, %v1260
    %v1262 = vpop.f32.mrb[0].mxu0
    %1263 = vmatprep.mubr.bf16.mxu0 0
    %1264 = vmatmul.mubr.bf16.gmra.mrb[0].mxu0 %v1129
    %v1265 = vpop.f32.mrb[0].mxu0
    %v1266 = vadd.f32 %v1093, %v1265
    %v1267 = vpop.f32.mrb[0].mxu0
    %v1268 = vpop.f32.mrb[0].mxu0
    %v1269 = vadd.f32 %v1093, %v1268
    %v1270 = vpop.f32.mrb[0].mxu0
    %1271 = vmatprep.mubr.bf16.mxu0 0
    %1272 = vmatmul.mubr.bf16.gmra.mrb[0].mxu0 %v1132
    %v1273 = vpop.f32.mrb[0].mxu0
    %v1274 = vadd.f32 %v1093, %v1273
    %v1275 = vpop.f32.mrb[0].mxu0
    %v1276 = vpop.f32.mrb[0].mxu0
    %v1277 = vadd.f32 %v1093, %v1276
    %v1278 = vpop.f32.mrb[0].mxu0
    %1279 = vmatprep.mubr.bf16.mxu0 0
    %1280 = vmatmul.mubr.bf16.gmra.mrb[0].mxu0 %v1135
    %v1281 = vpop.f32.mrb[0].mxu0
    %v1282 = vadd.f32 %v1093, %v1281
    %v1283 = vpop.f32.mrb[0].mxu0
    %v1284 = vpop.f32.mrb[0].mxu0
    %v1285 = vadd.f32 %v1093, %v1284
    %v1286 = vpop.f32.mrb[0].mxu0
    %1287 = vmatprep.mubr.bf16.mxu0 0
    %1288 = vmatmul.mubr.bf16.gmra.mrb[0].mxu0 %v1138
    %v1289 = vpop.f32.mrb[0].mxu0
    %v1290 = vadd.f32 %v1093, %v1289
    %v1291 = vpop.f32.mrb[0].mxu0
    %v1292 = vpop.f32.mrb[0].mxu0
    %v1293 = vadd.f32 %v1093, %v1292
    %v1294 = vpop.f32.mrb[0].mxu0
    %1295 = vmatprep.mubr.bf16.mxu0 0
    %1296 = vmatmul.mubr.bf16.gmra.mrb[0].mxu0 %v1141
    %v1297 = vpop.f32.mrb[0].mxu0
    %v1298 = vadd.f32 %v1093, %v1297
    %v1299 = vpop.f32.mrb[0].mxu0
    %v1300 = vpop.f32.mrb[0].mxu0
    %v1301 = vadd.f32 %v1093, %v1300
    %v1302 = vpop.f32.mrb[0].mxu0
    %1303 = vdwg.mxu0
    %v1304 = vmul.f32 %v1178, %v1178
    %v1305 = vmul.f32 %v1181, %v1181
    %v1306 = vmul.f32 %v1186, %v1186
    %v1307 = vmul.f32 %v1189, %v1189
    %v1308 = vmul.f32 %v1194, %v1194
    %v1309 = vmul.f32 %v1197, %v1197
    %v1310 = vmul.f32 %v1202, %v1202
    %v1311 = vmul.f32 %v1205, %v1205
    %v1312 = vmul.f32 %v1210, %v1210
    %v1313 = vmul.f32 %v1213, %v1213
    %v1314 = vmul.f32 %v1218, %v1218
    %v1315 = vmul.f32 %v1221, %v1221
    %v1316 = vmul.f32 %v1226, %v1226
    %v1317 = vmul.f32 %v1229, %v1229
    %v1318 = vmul.f32 %v1234, %v1234
    %v1319 = vmul.f32 %v1237, %v1237
    %v1320 = vmul.f32 %v1242, %v1242
    %v1321 = vmul.f32 %v1245, %v1245
    %v1322 = vmul.f32 %v1250, %v1250
    %v1323 = vmul.f32 %v1253, %v1253
    %v1324 = vmul.f32 %v1258, %v1258
    %v1325 = vmul.f32 %v1261, %v1261
    %v1326 = vmul.f32 %v1266, %v1266
    %v1327 = vmul.f32 %v1269, %v1269
    %v1328 = vmul.f32 %v1274, %v1274
    %v1329 = vmul.f32 %v1277, %v1277
    %v1330 = vmul.f32 %v1282, %v1282
    %v1331 = vmul.f32 %v1285, %v1285
    %v1332 = vmul.f32 %v1290, %v1290
    %v1333 = vmul.f32 %v1293, %v1293
    %v1334 = vmul.f32 %v1298, %v1298
    %v1335 = vmul.f32 %v1301, %v1301
    %vm1336 = vcmask 31744
    %v1337 = vsel %vm1336, %v1304, 0.0
    %v1338 = vsel %vm1336, %v1305, 0.0
    %v1339 = vadd.f32 %v1337, %v1338
    %v1340 = vsel %vm1336, %v1306, 0.0
    %v1341 = vadd.f32 %v1339, %v1340
    %v1342 = vsel %vm1336, %v1307, 0.0
    %v1343 = vadd.f32 %v1341, %v1342
    %v1344 = vsel %vm1336, %v1308, 0.0
    %v1345 = vadd.f32 %v1343, %v1344
    %v1346 = vsel %vm1336, %v1309, 0.0
    %v1347 = vadd.f32 %v1345, %v1346
    %v1348 = vsel %vm1336, %v1310, 0.0
    %v1349 = vadd.f32 %v1347, %v1348
    %v1350 = vsel %vm1336, %v1311, 0.0
    %v1351 = vadd.f32 %v1349, %v1350
    %v1352 = vsel %vm1336, %v1312, 0.0
    %v1353 = vadd.f32 %v1351, %v1352
    %v1354 = vsel %vm1336, %v1313, 0.0
    %v1355 = vadd.f32 %v1353, %v1354
    %v1356 = vsel %vm1336, %v1314, 0.0
    %v1357 = vadd.f32 %v1355, %v1356
    %v1358 = vsel %vm1336, %v1315, 0.0
    %v1359 = vadd.f32 %v1357, %v1358
    %v1360 = vsel %vm1336, %v1316, 0.0
    %v1361 = vadd.f32 %v1359, %v1360
    %v1362 = vsel %vm1336, %v1317, 0.0
    %v1363 = vadd.f32 %v1361, %v1362
    %v1364 = vsel %vm1336, %v1318, 0.0
    %v1365 = vadd.f32 %v1363, %v1364
    %v1366 = vsel %vm1336, %v1319, 0.0
    %v1367 = vadd.f32 %v1365, %v1366
    %v1368 = vsel %vm1336, %v1320, 0.0
    %v1369 = vadd.f32 %v1367, %v1368
    %v1370 = vsel %vm1336, %v1321, 0.0
    %v1371 = vadd.f32 %v1369, %v1370
    %v1372 = vsel %vm1336, %v1322, 0.0
    %v1373 = vadd.f32 %v1371, %v1372
    %v1374 = vsel %vm1336, %v1323, 0.0
    %v1375 = vadd.f32 %v1373, %v1374
    %v1376 = vsel %vm1336, %v1324, 0.0
    %v1377 = vadd.f32 %v1375, %v1376
    %v1378 = vsel %vm1336, %v1325, 0.0
    %v1379 = vadd.f32 %v1377, %v1378
    %v1380 = vsel %vm1336, %v1326, 0.0
    %v1381 = vadd.f32 %v1379, %v1380
    %v1382 = vsel %vm1336, %v1327, 0.0
    %v1383 = vadd.f32 %v1381, %v1382
    %v1384 = vsel %vm1336, %v1328, 0.0
    %v1385 = vadd.f32 %v1383, %v1384
    %v1386 = vsel %vm1336, %v1329, 0.0
    %v1387 = vadd.f32 %v1385, %v1386
    %v1388 = vsel %vm1336, %v1330, 0.0
    %v1389 = vadd.f32 %v1387, %v1388
    %v1390 = vsel %vm1336, %v1331, 0.0
    %v1391 = vadd.f32 %v1389, %v1390
    %v1392 = vsel %vm1336, %v1332, 0.0
    %v1393 = vadd.f32 %v1391, %v1392
    %v1394 = vsel %vm1336, %v1333, 0.0
    %v1395 = vadd.f32 %v1393, %v1394
    %v1396 = vsel %vm1336, %v1334, 0.0
    %v1397 = vadd.f32 %v1395, %v1396
    %v1398 = vsel %vm1336, %v1335, 0.0
    %v1399 = vadd.f32 %v1397, %v1398
    %1400 = vadd.xlane.f32.xlu0 %v1399
    %v1401 = vpop.xlane.xlu0 %1400
    %v1402 = vrot.slane %v1401, 4
    %v1403 = vadd.f32 %v1401, %v1402
    %v1404 = vrot.slane %v1403, 2
    %v1405 = vadd.f32 %v1403, %v1404
    %v1406 = vrot.slane %v1405, 1
    %v1407 = vadd.f32 %v1405, %v1406
    %s1408 = vtos %v1407
    %v1409 = vstv %s1408
    %v1410 = vmul.f32 %v1409, 0.0009765625
    %vm1411 = vcmask 0
    %1412 = vst.msk [vmem:[#allocation5] sm:$0x1] %vm1411, %v1410
    // Predicated region
    $region38: #{model_forward.1} parent=1 // pred_check
      _
    $region39: #{model_forward.1} parent=1 // pred_check_branch
      %1414 = sbr.rel (0) target = $region41
    $region40: #{model_forward.1} parent=1 // pred_region
      %s1416 = ssub.s32 16, 16
      %1417 = vsyncadd [#allocation4], %s1416
      %s1419 = sshll.u32 [#allocation5], 4
      %s1420 = int_to_ptr.vmem [resolvable:$true] %s1419
      %1422 = dma.vmem_to_hbm [thread:$0]  %s1420, 16, %s8, [#allocation4]
    $region41: #{model_forward.1} parent=1 // pred_fallthru
      _
    // Predicated region
    $region42: #{model_forward.1} parent=1 // pred_check
      _
    $region43: #{model_forward.1} parent=1 // pred_check_branch
      %1424 = sbr.rel (0) target = $region45
    $region44: #{model_forward.1} parent=1 // pred_region
      %1425 = dma.done [#allocation4], 16
    $region45: #{model_forward.1} parent=1 // pred_fallthru
      _
    %1426 = vsyncpa [#allocation3], 1
    %1427 = vsyncpa [#allocation4], 1

</llo_original>
